<compile_context>
chip_gen: v7x
topology: tpu7x:2x2x1
jax: 0.10.0
libtpu: 0.0.40
codegen_flags: <defaults>
</compile_context>

<pallas_src>
import functools

import jax
import jax.numpy as jnp
import numpy as np
from jax import lax
from jax.experimental import pallas as pl
from jax.experimental.pallas import tpu as pltpu


def _fused_kernel(depth, kd_taps, eps, inv_n,
                  fc_lhs_ref, wfc_ref, x_ref, bigw_ref, pmat_ref,
                  g1_ref, g2_ref, beta_ref, o_ref, acc_ref, nrm_ref):
    """grid = (phase, row-tile).

    phase 0: accumulate per-column sum / sum-of-squares of both pre-BN paths.
    phase 1: (tile 0) finalize per-channel mean / scale, then normalize+add+store.
    Pre-BN tiles are cheaply recomputed in phase 1 instead of round-tripping HBM.
    """
    ph = pl.program_id(0)
    t = pl.program_id(1)

    # ---- pre-BN activations for this row tile (lane-dense (D, H*W*C)) ------
    # fc: one (D, D*Fin) @ (D*Fin, HWC) matmul; the block-diagonal lhs encodes
    # "output row d uses weight slice d" (no per-depth mini-matmuls, no reshape).
    fc_tile = jnp.dot(fc_lhs_ref[0], wfc_ref[...],
                      preferred_element_type=jnp.float32)          # (D, HWC)

    # conv3d: depth taps = row shifts of the depth-padded slab; (kh, kw, ci->co)
    # taps and h/w zero padding are baked into the precomputed bigw[dd] matrices.
    conv_tile = jnp.zeros_like(fc_tile)
    for dd in range(kd_taps):                                      # static unroll
        conv_tile = conv_tile + jnp.dot(
            x_ref[0, dd:dd + depth, :], bigw_ref[dd],
            preferred_element_type=jnp.float32)                    # (D, HWC)

    # ---- phase 0: accumulate per-column statistics --------------------------
    @pl.when(jnp.logical_and(ph == 0, t == 0))
    def _init():
        acc_ref[...] = jnp.zeros_like(acc_ref)

    @pl.when(ph == 0)
    def _accumulate():
        acc_ref[0:1, :] = acc_ref[0:1, :] + jnp.sum(fc_tile, axis=0, keepdims=True)
        acc_ref[1:2, :] = acc_ref[1:2, :] + jnp.sum(fc_tile * fc_tile, axis=0,
                                                    keepdims=True)
        acc_ref[2:3, :] = acc_ref[2:3, :] + jnp.sum(conv_tile, axis=0, keepdims=True)
        acc_ref[3:4, :] = acc_ref[3:4, :] + jnp.sum(conv_tile * conv_tile, axis=0,
                                                    keepdims=True)

    # ---- phase 1, tile 0: per-channel mean / scale (biased batch variance) --
    @pl.when(jnp.logical_and(ph == 1, t == 0))
    def _finalize():
        # column sums -> per-channel sums broadcast back to columns via pmat.
        stats = jnp.dot(acc_ref[...], pmat_ref[...],
                        preferred_element_type=jnp.float32) * inv_n  # (8, HWC)
        m1 = stats[0:1, :]
        m2 = stats[2:3, :]
        v1 = stats[1:2, :] - m1 * m1
        v2 = stats[3:4, :] - m2 * m2
        nrm_ref[0:1, :] = m1
        nrm_ref[1:2, :] = g1_ref[...] * lax.rsqrt(v1 + eps)
        nrm_ref[2:3, :] = m2
        nrm_ref[3:4, :] = g2_ref[...] * lax.rsqrt(v2 + eps)

    # ---- phase 1: normalize both paths, add folded bias, lane-dense store ---
    @pl.when(ph == 1)
    def _store():
        m1 = nrm_ref[0:1, :]
        s1 = nrm_ref[1:2, :]
        m2 = nrm_ref[2:3, :]
        s2 = nrm_ref[3:4, :]
        o_ref[0] = (fc_tile - m1) * s1 + (conv_tile - m2) * s2 + beta_ref[...]


def prepare_params(params, output_shape, kernel_size):
    """One-time (hoisted) parameter layout transforms for the fused kernel."""
    _, C, D, H, W = output_shape
    k = kernel_size
    p = (k - 1) // 2
    hw = H * W
    hwc = hw * C

    w_lin = params["fc_weight"]                      # (C*D*H*W, Fin), torch Linear
    fin = w_lin.shape[1]
    w_conv = params["conv_weight"]                   # (Cout, Cin, k, k, k)
    cout, cin = int(w_conv.shape[0]), int(w_conv.shape[1])
    assert cin == C and cout == C, "module requires Cin == Cout == output channels"

    # fc weight -> (D*Fin, H*W*C) so the kernel does one block-diagonal matmul.
    wfc = jnp.transpose(w_lin.reshape(C, D, H, W, fin), (1, 4, 2, 3, 0))
    wfc_blk = wfc.reshape(D * fin, hwc).astype(jnp.float32)

    # conv weight -> per-depth-tap block-sparse (H*W*Cin, H*W*Cout) matrices.
    io = jnp.arange(hw)
    h_i = io // W
    w_i = io % W
    dh = h_i[:, None] - h_i[None, :] + p             # h_in - h_out + p
    dw = w_i[:, None] - w_i[None, :] + p
    valid = (dh >= 0) & (dh < k) & (dw >= 0) & (dw < k)
    dh_c = jnp.clip(dh, 0, k - 1)
    dw_c = jnp.clip(dw, 0, k - 1)
    w_perm = jnp.transpose(w_conv, (2, 3, 4, 1, 0))  # (kd, kh, kw, Cin, Cout)
    gath = w_perm[:, dh_c, dw_c, :, :]               # (kd, hw_in, hw_out, Cin, Cout)
    gath = jnp.where(valid[None, :, :, None, None], gath, 0.0)
    bigw = jnp.transpose(gath, (0, 1, 3, 2, 4)).reshape(k, hw * cin, hw * cout)
    bigw = bigw.astype(jnp.float32)

    # per-channel -> per-column broadcasts (channel is fastest in the slab column).
    def cols(vec_c):
        return jnp.tile(vec_c.reshape(-1), hw).reshape(1, hwc).astype(jnp.float32)

    g1_cols = cols(params["bn1_weight"])
    g2_cols = cols(params["bn2_weight"])
    beta_cols = cols(params["bn1_bias"] + params["bn2_bias"]
                     + params["bias"].reshape(-1))   # folded shift terms

    # channel-grouping matrix: col_sums @ pmat = per-channel sums per column.
    chan = jnp.arange(hwc) % C
    pmat = (chan[:, None] == chan[None, :]).astype(jnp.float32)

    return dict(wfc_blk=wfc_blk, bigw=bigw, g1_cols=g1_cols, g2_cols=g2_cols,
                beta_cols=beta_cols, pmat=pmat,
                dims=dict(C=C, D=D, H=H, W=W, k=k, p=p, fin=fin, cin=cin))


def bn_fcconv3d_forward(fc7, h, prep, time=0, eps=1e-5):
    # `time` only selects which running-stat buffer torch would update; in
    # training mode the returned tensor does not depend on it.
    del time
    d = prep["dims"]
    C, D, H, W, k, p, fin = d["C"], d["D"], d["H"], d["W"], d["k"], d["p"], d["fin"]
    hwc = H * W * C
    B = fc7.shape[0]
    n_total = B * D * H * W                       # elements per channel for BN stats

    # --- layout glue (cheap; no im2col expansion) ----------------------------
    # block-diagonal fc lhs: row d of a tile picks weight slice d.
    eye = jnp.eye(D, dtype=jnp.float32)
    fc_lhs = (fc7.astype(jnp.float32)[:, None, None, :]
              * eye[None, :, :, None]).reshape(B, D, D * fin)
    # conv input: NCDHW -> (B, D, H*W*Cin) channel-last slab, zero-pad depth taps.
    x = jnp.transpose(h, (0, 2, 3, 4, 1)).reshape(B, D, H * W * d["cin"])
    x_slab = jnp.pad(x.astype(jnp.float32), ((0, 0), (p, p), (0, 0)))

    kernel = functools.partial(_fused_kernel, D, k, eps, 1.0 / n_total)
    const2 = lambda ph, t: (0, 0)
    const3 = lambda ph, t: (0, 0, 0)

    out_slab = pl.pallas_call(
        kernel,
        out_shape=jax.ShapeDtypeStruct((B, D, hwc), jnp.float32),
        grid=(2, B),                               # (phase, batch/row tile)
        in_specs=[
            pl.BlockSpec((1, D, D * fin), lambda ph, t: (t, 0, 0)),      # fc lhs
            pl.BlockSpec((D * fin, hwc), const2),                        # fc weight
            pl.BlockSpec((1, D + 2 * p, hwc), lambda ph, t: (t, 0, 0)),  # conv input
            pl.BlockSpec((k, hwc, hwc), const3),                         # conv weight
            pl.BlockSpec((hwc, hwc), const2),                            # channel pool
            pl.BlockSpec((1, hwc), const2),                              # gamma1 cols
            pl.BlockSpec((1, hwc), const2),                              # gamma2 cols
            pl.BlockSpec((1, hwc), const2),                              # folded beta
        ],
        # phase 0 never writes; pin its (unwritten) output block index to 0 so no
        # block is flushed to HBM before phase 1 produces the real rows.
        out_specs=pl.BlockSpec((1, D, hwc), lambda ph, t: (ph * t, 0, 0)),
        scratch_shapes=[pltpu.VMEM((8, hwc), jnp.float32),   # rows 0-3: sum/sumsq
                        pltpu.VMEM((8, hwc), jnp.float32)],  # rows 0-3: m1,s1,m2,s2
        compiler_params=pltpu.CompilerParams(
            dimension_semantics=("arbitrary", "arbitrary"),
            vmem_limit_bytes=32 * 1024 * 1024),
    )(fc_lhs, prep["wfc_blk"], x_slab, prep["bigw"], prep["pmat"],
      prep["g1_cols"], prep["g2_cols"], prep["beta_cols"])

    out = out_slab.reshape(B, D, H, W, C)
    return jnp.transpose(out, (0, 4, 1, 2, 3))     # back to NCDHW


def reference_forward(fc7, h, params, output_shape, eps=1e-5):
    """Pure-JAX reference mirroring the torch forward (training-mode BN)."""
    _, C, D, H, W = output_shape
    B = fc7.shape[0]
    fc = (fc7 @ params["fc_weight"].T).reshape(B, C, D, H, W)
    conv = lax.conv_general_dilated(
        h, params["conv_weight"], window_strides=(1, 1, 1), padding="SAME",
        dimension_numbers=("NCDHW", "OIDHW", "NCDHW"))

    def bn(x, g, b):
        mean = x.mean(axis=(0, 2, 3, 4), keepdims=True)
        var = ((x - mean) ** 2).mean(axis=(0, 2, 3, 4), keepdims=True)
        return ((x - mean) / jnp.sqrt(var + eps)
                * g.reshape(1, -1, 1, 1, 1) + b.reshape(1, -1, 1, 1, 1))

    return (bn(fc, params["bn1_weight"], params["bn1_bias"])
            + bn(conv, params["bn2_weight"], params["bn2_bias"])
            + params["bias"])


if __name__ == "__main__":
    key = jax.random.PRNGKey(0)
    B, Fin = 2, 32                        # batch, fc_w_fan_in
    C, D, H, W = 4, 8, 8, 8               # output_shape[1:] ; filter_shape=(4,4,3)
    k = 3
    output_shape = (B, C, D, H, W)

    k0, k1, k2, k3 = jax.random.split(key, 4)
    fc7 = jax.random.normal(k0, (B, Fin), jnp.float32)
    h = jax.random.normal(k1, (B, C, D, H, W), jnp.float32)

    params = {
        "fc_weight": 0.05 * jax.random.normal(k2, (C * D * H * W, Fin), jnp.float32),
        "conv_weight": 0.05 * jax.random.normal(k3, (C, C, k, k, k), jnp.float32),
        "bn1_weight": jnp.full((C,), 0.1, jnp.float32),   # reset_parameters()
        "bn1_bias": jnp.zeros((C,), jnp.float32),
        "bn2_weight": jnp.full((C,), 0.1, jnp.float32),
        "bn2_bias": jnp.zeros((C,), jnp.float32),
        "bias": jnp.full((1, C, 1, 1, 1), 0.1, jnp.float32),
    }

    prep = prepare_params(params, output_shape, k)       # hoisted: done once
    out = jax.block_until_ready(
        bn_fcconv3d_forward(fc7, h, prep, time=3))
    ref = reference_forward(fc7, h, params, output_shape)
    np.testing.assert_allclose(np.asarray(out), np.asarray(ref),
                               atol=1e-3, rtol=1e-3)
    print("KERNEL_OK")
</pallas_src>

<mosaic_0001>
module attributes {stable_mosaic.version = 11 : i64} {
  func.func @_fused_kernel(%arg0: i32, %arg1: i32, %arg2: memref<1x8x256xf32, #tpu.memory_space<vmem>>, %arg3: memref<256x256xf32, #tpu.memory_space<vmem>>, %arg4: memref<1x10x256xf32, #tpu.memory_space<vmem>>, %arg5: memref<3x256x256xf32, #tpu.memory_space<vmem>>, %arg6: memref<256x256xf32, #tpu.memory_space<vmem>>, %arg7: memref<1x256xf32, #tpu.memory_space<vmem>>, %arg8: memref<1x256xf32, #tpu.memory_space<vmem>>, %arg9: memref<1x256xf32, #tpu.memory_space<vmem>>, %arg10: memref<1x8x256xf32, #tpu.memory_space<vmem>>, %arg11: memref<8x256xf32, #tpu.memory_space<vmem>>, %arg12: memref<8x256xf32, #tpu.memory_space<vmem>>) attributes {dimension_semantics = [#tpu.dimension_semantics<arbitrary>, #tpu.dimension_semantics<arbitrary>], iteration_bounds = array<i64: 2, 2>, scalar_prefetch = 0 : i64, scratch_operands = 2 : i64, tpu.core_type = #tpu.core_type<tc>, window_params = [{transform_indices = @transform_0, window_bounds = array<i64: 1, 8, 256>}, {pipeline_mode = #tpu.pipeline_mode<synchronous>, transform_indices = @transform_1, window_bounds = array<i64: 256, 256>}, {transform_indices = @transform_2, window_bounds = array<i64: 1, 10, 256>}, {pipeline_mode = #tpu.pipeline_mode<synchronous>, transform_indices = @transform_3, window_bounds = array<i64: 3, 256, 256>}, {pipeline_mode = #tpu.pipeline_mode<synchronous>, transform_indices = @transform_4, window_bounds = array<i64: 256, 256>}, {pipeline_mode = #tpu.pipeline_mode<synchronous>, transform_indices = @transform_5, window_bounds = array<i64: 1, 256>}, {pipeline_mode = #tpu.pipeline_mode<synchronous>, transform_indices = @transform_6, window_bounds = array<i64: 1, 256>}, {pipeline_mode = #tpu.pipeline_mode<synchronous>, transform_indices = @transform_7, window_bounds = array<i64: 1, 256>}, {transform_indices = @transform_8, window_bounds = array<i64: 1, 8, 256>}]} {
    %c0 = arith.constant 0 : index
    %c0_0 = arith.constant 0 : index
    %c0_1 = arith.constant 0 : index
    %0 = vector.load %arg2[%c0, %c0_0, %c0_1] : memref<1x8x256xf32, #tpu.memory_space<vmem>>, vector<1x8x256xf32>
    %1 = vector.shape_cast %0 : vector<1x8x256xf32> to vector<8x256xf32>
    %c0_2 = arith.constant 0 : index
    %c0_3 = arith.constant 0 : index
    %2 = vector.load %arg3[%c0_2, %c0_3] : memref<256x256xf32, #tpu.memory_space<vmem>>, vector<256x256xf32>
    %cst = arith.constant dense<0.000000e+00> : vector<8x256xf32>
    %3 = tpu.matmul %1, %2, %cst {dimension_numbers = #tpu.dot_dimension_numbers<[1], [0], [0], [1], [0, 0, 1, 1], [], []>} : vector<8x256xf32>, vector<256x256xf32>, vector<8x256xf32> -> vector<8x256xf32>
    %cst_4 = arith.constant 0.000000e+00 : f32
    %4 = vector.broadcast %cst_4 : f32 to vector<8x256xf32>
    %c0_5 = arith.constant 0 : index
    %c0_6 = arith.constant 0 : index
    %c0_7 = arith.constant 0 : index
    %5 = vector.load %arg4[%c0_5, %c0_6, %c0_7] : memref<1x10x256xf32, #tpu.memory_space<vmem>>, vector<1x8x256xf32>
    %6 = vector.shape_cast %5 : vector<1x8x256xf32> to vector<8x256xf32>
    %c0_8 = arith.constant 0 : index
    %c0_9 = arith.constant 0 : index
    %c0_10 = arith.constant 0 : index
    %7 = vector.load %arg5[%c0_8, %c0_9, %c0_10] : memref<3x256x256xf32, #tpu.memory_space<vmem>>, vector<1x256x256xf32>
    %8 = vector.shape_cast %7 : vector<1x256x256xf32> to vector<256x256xf32>
    %cst_11 = arith.constant dense<0.000000e+00> : vector<8x256xf32>
    %9 = tpu.matmul %6, %8, %cst_11 {dimension_numbers = #tpu.dot_dimension_numbers<[1], [0], [0], [1], [0, 0, 1, 1], [], []>} : vector<8x256xf32>, vector<256x256xf32>, vector<8x256xf32> -> vector<8x256xf32>
    %10 = arith.addf %4, %9 : vector<8x256xf32>
    %c0_12 = arith.constant 0 : index
    %c1 = arith.constant 1 : index
    %c0_13 = arith.constant 0 : index
    %11 = vector.load %arg4[%c0_12, %c1, %c0_13] : memref<1x10x256xf32, #tpu.memory_space<vmem>>, vector<1x8x256xf32>
    %12 = vector.shape_cast %11 : vector<1x8x256xf32> to vector<8x256xf32>
    %c1_14 = arith.constant 1 : index
    %c0_15 = arith.constant 0 : index
    %c0_16 = arith.constant 0 : index
    %13 = vector.load %arg5[%c1_14, %c0_15, %c0_16] : memref<3x256x256xf32, #tpu.memory_space<vmem>>, vector<1x256x256xf32>
    %14 = vector.shape_cast %13 : vector<1x256x256xf32> to vector<256x256xf32>
    %cst_17 = arith.constant dense<0.000000e+00> : vector<8x256xf32>
    %15 = tpu.matmul %12, %14, %cst_17 {dimension_numbers = #tpu.dot_dimension_numbers<[1], [0], [0], [1], [0, 0, 1, 1], [], []>} : vector<8x256xf32>, vector<256x256xf32>, vector<8x256xf32> -> vector<8x256xf32>
    %16 = arith.addf %10, %15 : vector<8x256xf32>
    %c0_18 = arith.constant 0 : index
    %c2 = arith.constant 2 : index
    %c0_19 = arith.constant 0 : index
    %17 = vector.load %arg4[%c0_18, %c2, %c0_19] : memref<1x10x256xf32, #tpu.memory_space<vmem>>, vector<1x8x256xf32>
    %18 = vector.shape_cast %17 : vector<1x8x256xf32> to vector<8x256xf32>
    %c2_20 = arith.constant 2 : index
    %c0_21 = arith.constant 0 : index
    %c0_22 = arith.constant 0 : index
    %19 = vector.load %arg5[%c2_20, %c0_21, %c0_22] : memref<3x256x256xf32, #tpu.memory_space<vmem>>, vector<1x256x256xf32>
    %20 = vector.shape_cast %19 : vector<1x256x256xf32> to vector<256x256xf32>
    %cst_23 = arith.constant dense<0.000000e+00> : vector<8x256xf32>
    %21 = tpu.matmul %18, %20, %cst_23 {dimension_numbers = #tpu.dot_dimension_numbers<[1], [0], [0], [1], [0, 0, 1, 1], [], []>} : vector<8x256xf32>, vector<256x256xf32>, vector<8x256xf32> -> vector<8x256xf32>
    %22 = arith.addf %16, %21 : vector<8x256xf32>
    %c0_i32 = arith.constant 0 : i32
    %23 = arith.cmpi eq, %arg0, %c0_i32 : i32
    %c0_i32_24 = arith.constant 0 : i32
    %24 = arith.cmpi eq, %arg1, %c0_i32_24 : i32
    %25 = arith.andi %23, %24 : i1
    %26 = arith.extui %25 : i1 to i32
    %c0_i32_25 = arith.constant 0 : i32
    %27 = arith.cmpi ne, %26, %c0_i32_25 : i32
    scf.if %27 {
      %cst_32 = arith.constant 0.000000e+00 : f32
      %39 = vector.broadcast %cst_32 : f32 to vector<8x256xf32>
      %c0_33 = arith.constant 0 : index
      %c0_34 = arith.constant 0 : index
      %40 = vector.load %arg11[%c0_33, %c0_34] : memref<8x256xf32, #tpu.memory_space<vmem>>, vector<8x256xf32>
      tpu.vector_store %arg11[%c0_33, %c0_34], %39 {strides = array<i32>} : memref<8x256xf32, #tpu.memory_space<vmem>>, vector<8x256xf32>,
    } else {
    }
    %c0_i32_26 = arith.constant 0 : i32
    %28 = arith.cmpi eq, %arg0, %c0_i32_26 : i32
    %29 = arith.extui %28 : i1 to i32
    %c0_i32_27 = arith.constant 0 : i32
    %30 = arith.cmpi ne, %29, %c0_i32_27 : i32
    scf.if %30 {
      %c0_32 = arith.constant 0 : index
      %c0_33 = arith.constant 0 : index
      %39 = vector.load %arg11[%c0_32, %c0_33] : memref<8x256xf32, #tpu.memory_space<vmem>>, vector<1x256xf32>
      %cst_34 = arith.constant dense<0.000000e+00> : vector<256xf32>
      %40 = vector.multi_reduction <add>, %3, %cst_34 [0] : vector<8x256xf32> to vector<256xf32>
      %41 = vector.shape_cast %40 : vector<256xf32> to vector<1x256xf32>
      %42 = arith.addf %39, %41 : vector<1x256xf32>
      %c0_35 = arith.constant 0 : index
      %c0_36 = arith.constant 0 : index
      %43 = vector.load %arg11[%c0_35, %c0_36] : memref<8x256xf32, #tpu.memory_space<vmem>>, vector<1x256xf32>
      tpu.vector_store %arg11[%c0_35, %c0_36], %42 {strides = array<i32>} : memref<8x256xf32, #tpu.memory_space<vmem>>, vector<1x256xf32>,
      %c1_37 = arith.constant 1 : index
      %c0_38 = arith.constant 0 : index
      %44 = vector.load %arg11[%c1_37, %c0_38] : memref<8x256xf32, #tpu.memory_space<vmem>>, vector<1x256xf32>
      %45 = arith.mulf %3, %3 : vector<8x256xf32>
      %cst_39 = arith.constant dense<0.000000e+00> : vector<256xf32>
      %46 = vector.multi_reduction <add>, %45, %cst_39 [0] : vector<8x256xf32> to vector<256xf32>
      %47 = vector.shape_cast %46 : vector<256xf32> to vector<1x256xf32>
      %48 = arith.addf %44, %47 : vector<1x256xf32>
      %c1_40 = arith.constant 1 : index
      %c0_41 = arith.constant 0 : index
      %49 = vector.load %arg11[%c1_40, %c0_41] : memref<8x256xf32, #tpu.memory_space<vmem>>, vector<1x256xf32>
      tpu.vector_store %arg11[%c1_40, %c0_41], %48 {strides = array<i32>} : memref<8x256xf32, #tpu.memory_space<vmem>>, vector<1x256xf32>,
      %c2_42 = arith.constant 2 : index
      %c0_43 = arith.constant 0 : index
      %50 = vector.load %arg11[%c2_42, %c0_43] : memref<8x256xf32, #tpu.memory_space<vmem>>, vector<1x256xf32>
      %cst_44 = arith.constant dense<0.000000e+00> : vector<256xf32>
      %51 = vector.multi_reduction <add>, %22, %cst_44 [0] : vector<8x256xf32> to vector<256xf32>
      %52 = vector.shape_cast %51 : vector<256xf32> to vector<1x256xf32>
      %53 = arith.addf %50, %52 : vector<1x256xf32>
      %c2_45 = arith.constant 2 : index
      %c0_46 = arith.constant 0 : index
      %54 = vector.load %arg11[%c2_45, %c0_46] : memref<8x256xf32, #tpu.memory_space<vmem>>, vector<1x256xf32>
      tpu.vector_store %arg11[%c2_45, %c0_46], %53 {strides = array<i32>} : memref<8x256xf32, #tpu.memory_space<vmem>>, vector<1x256xf32>,
      %c3 = arith.constant 3 : index
      %c0_47 = arith.constant 0 : index
      %55 = vector.load %arg11[%c3, %c0_47] : memref<8x256xf32, #tpu.memory_space<vmem>>, vector<1x256xf32>
      %56 = arith.mulf %22, %22 : vector<8x256xf32>
      %cst_48 = arith.constant dense<0.000000e+00> : vector<256xf32>
      %57 = vector.multi_reduction <add>, %56, %cst_48 [0] : vector<8x256xf32> to vector<256xf32>
      %58 = vector.shape_cast %57 : vector<256xf32> to vector<1x256xf32>
      %59 = arith.addf %55, %58 : vector<1x256xf32>
      %c3_49 = arith.constant 3 : index
      %c0_50 = arith.constant 0 : index
      %60 = vector.load %arg11[%c3_49, %c0_50] : memref<8x256xf32, #tpu.memory_space<vmem>>, vector<1x256xf32>
      tpu.vector_store %arg11[%c3_49, %c0_50], %59 {strides = array<i32>} : memref<8x256xf32, #tpu.memory_space<vmem>>, vector<1x256xf32>,
    } else {
    }
    %c1_i32 = arith.constant 1 : i32
    %31 = arith.cmpi eq, %arg0, %c1_i32 : i32
    %c0_i32_28 = arith.constant 0 : i32
    %32 = arith.cmpi eq, %arg1, %c0_i32_28 : i32
    %33 = arith.andi %31, %32 : i1
    %34 = arith.extui %33 : i1 to i32
    %c0_i32_29 = arith.constant 0 : i32
    %35 = arith.cmpi ne, %34, %c0_i32_29 : i32
    scf.if %35 {
      %c0_32 = arith.constant 0 : index
      %c0_33 = arith.constant 0 : index
      %39 = vector.load %arg11[%c0_32, %c0_33] : memref<8x256xf32, #tpu.memory_space<vmem>>, vector<8x256xf32>
      %c0_34 = arith.constant 0 : index
      %c0_35 = arith.constant 0 : index
      %40 = vector.load %arg6[%c0_34, %c0_35] : memref<256x256xf32, #tpu.memory_space<vmem>>, vector<256x256xf32>
      %cst_36 = arith.constant dense<0.000000e+00> : vector<8x256xf32>
      %41 = tpu.matmul %39, %40, %cst_36 {dimension_numbers = #tpu.dot_dimension_numbers<[1], [0], [0], [1], [0, 0, 1, 1], [], []>} : vector<8x256xf32>, vector<256x256xf32>, vector<8x256xf32> -> vector<8x256xf32>
      %cst_37 = arith.constant 9.765625E-4 : f32
      %42 = vector.broadcast %cst_37 : f32 to vector<8x256xf32>
      %43 = arith.mulf %41, %42 : vector<8x256xf32>
      %44 = vector.extract_strided_slice %43 {offsets = [0, 0], sizes = [1, 256], strides = [1, 1]} : vector<8x256xf32> to vector<1x256xf32>
      %45 = vector.extract_strided_slice %43 {offsets = [2, 0], sizes = [1, 256], strides = [1, 1]} : vector<8x256xf32> to vector<1x256xf32>
      %46 = vector.extract_strided_slice %43 {offsets = [1, 0], sizes = [1, 256], strides = [1, 1]} : vector<8x256xf32> to vector<1x256xf32>
      %47 = arith.mulf %44, %44 : vector<1x256xf32>
      %48 = arith.subf %46, %47 : vector<1x256xf32>
      %49 = vector.extract_strided_slice %43 {offsets = [3, 0], sizes = [1, 256], strides = [1, 1]} : vector<8x256xf32> to vector<1x256xf32>
      %50 = arith.mulf %45, %45 : vector<1x256xf32>
      %51 = arith.subf %49, %50 : vector<1x256xf32>
      %c0_38 = arith.constant 0 : index
      %c0_39 = arith.constant 0 : index
      %52 = vector.load %arg12[%c0_38, %c0_39] : memref<8x256xf32, #tpu.memory_space<vmem>>, vector<1x256xf32>
      tpu.vector_store %arg12[%c0_38, %c0_39], %44 {strides = array<i32>} : memref<8x256xf32, #tpu.memory_space<vmem>>, vector<1x256xf32>,
      %c0_40 = arith.constant 0 : index
      %c0_41 = arith.constant 0 : index
      %53 = vector.load %arg7[%c0_40, %c0_41] : memref<1x256xf32, #tpu.memory_space<vmem>>, vector<1x256xf32>
      %cst_42 = arith.constant 9.99999974E-6 : f32
      %54 = vector.broadcast %cst_42 : f32 to vector<1x256xf32>
      %55 = arith.addf %48, %54 : vector<1x256xf32>
      %56 = math.rsqrt %55 : vector<1x256xf32>
      %57 = arith.mulf %53, %56 : vector<1x256xf32>
      %c1_43 = arith.constant 1 : index
      %c0_44 = arith.constant 0 : index
      %58 = vector.load %arg12[%c1_43, %c0_44] : memref<8x256xf32, #tpu.memory_space<vmem>>, vector<1x256xf32>
      tpu.vector_store %arg12[%c1_43, %c0_44], %57 {strides = array<i32>} : memref<8x256xf32, #tpu.memory_space<vmem>>, vector<1x256xf32>,
      %c2_45 = arith.constant 2 : index
      %c0_46 = arith.constant 0 : index
      %59 = vector.load %arg12[%c2_45, %c0_46] : memref<8x256xf32, #tpu.memory_space<vmem>>, vector<1x256xf32>
      tpu.vector_store %arg12[%c2_45, %c0_46], %45 {strides = array<i32>} : memref<8x256xf32, #tpu.memory_space<vmem>>, vector<1x256xf32>,
      %c0_47 = arith.constant 0 : index
      %c0_48 = arith.constant 0 : index
      %60 = vector.load %arg8[%c0_47, %c0_48] : memref<1x256xf32, #tpu.memory_space<vmem>>, vector<1x256xf32>
      %cst_49 = arith.constant 9.99999974E-6 : f32
      %61 = vector.broadcast %cst_49 : f32 to vector<1x256xf32>
      %62 = arith.addf %51, %61 : vector<1x256xf32>
      %63 = math.rsqrt %62 : vector<1x256xf32>
      %64 = arith.mulf %60, %63 : vector<1x256xf32>
      %c3 = arith.constant 3 : index
      %c0_50 = arith.constant 0 : index
      %65 = vector.load %arg12[%c3, %c0_50] : memref<8x256xf32, #tpu.memory_space<vmem>>, vector<1x256xf32>
      tpu.vector_store %arg12[%c3, %c0_50], %64 {strides = array<i32>} : memref<8x256xf32, #tpu.memory_space<vmem>>, vector<1x256xf32>,
    } else {
    }
    %c1_i32_30 = arith.constant 1 : i32
    %36 = arith.cmpi eq, %arg0, %c1_i32_30 : i32
    %37 = arith.extui %36 : i1 to i32
    %c0_i32_31 = arith.constant 0 : i32
    %38 = arith.cmpi ne, %37, %c0_i32_31 : i32
    scf.if %38 {
      %c0_32 = arith.constant 0 : index
      %c0_33 = arith.constant 0 : index
      %39 = vector.load %arg12[%c0_32, %c0_33] : memref<8x256xf32, #tpu.memory_space<vmem>>, vector<1x256xf32>
      %c1_34 = arith.constant 1 : index
      %c0_35 = arith.constant 0 : index
      %40 = vector.load %arg12[%c1_34, %c0_35] : memref<8x256xf32, #tpu.memory_space<vmem>>, vector<1x256xf32>
      %c2_36 = arith.constant 2 : index
      %c0_37 = arith.constant 0 : index
      %41 = vector.load %arg12[%c2_36, %c0_37] : memref<8x256xf32, #tpu.memory_space<vmem>>, vector<1x256xf32>
      %c3 = arith.constant 3 : index
      %c0_38 = arith.constant 0 : index
      %42 = vector.load %arg12[%c3, %c0_38] : memref<8x256xf32, #tpu.memory_space<vmem>>, vector<1x256xf32>
      %43 = vector.broadcast %39 : vector<1x256xf32> to vector<8x256xf32>
      %44 = arith.subf %3, %43 : vector<8x256xf32>
      %45 = vector.broadcast %40 : vector<1x256xf32> to vector<8x256xf32>
      %46 = arith.mulf %44, %45 : vector<8x256xf32>
      %47 = vector.broadcast %41 : vector<1x256xf32> to vector<8x256xf32>
      %48 = arith.subf %22, %47 : vector<8x256xf32>
      %49 = vector.broadcast %42 : vector<1x256xf32> to vector<8x256xf32>
      %50 = arith.mulf %48, %49 : vector<8x256xf32>
      %51 = arith.addf %46, %50 : vector<8x256xf32>
      %c0_39 = arith.constant 0 : index
      %c0_40 = arith.constant 0 : index
      %52 = vector.load %arg9[%c0_39, %c0_40] : memref<1x256xf32, #tpu.memory_space<vmem>>, vector<1x256xf32>
      %53 = vector.broadcast %52 : vector<1x256xf32> to vector<8x256xf32>
      %54 = arith.addf %51, %53 : vector<8x256xf32>
      %c0_41 = arith.constant 0 : index
      %c0_42 = arith.constant 0 : index
      %c0_43 = arith.constant 0 : index
      %55 = vector.load %arg10[%c0_41, %c0_42, %c0_43] : memref<1x8x256xf32, #tpu.memory_space<vmem>>, vector<1x8x256xf32>
      %56 = vector.shape_cast %55 : vector<1x8x256xf32> to vector<8x256xf32>
      %57 = vector.shape_cast %54 : vector<8x256xf32> to vector<1x8x256xf32>
      tpu.vector_store %arg10[%c0_41, %c0_42, %c0_43], %57 {strides = array<i32>} : memref<1x8x256xf32, #tpu.memory_space<vmem>>, vector<1x8x256xf32>,
    } else {
    }
    return
  }
  func.func @transform_0(%arg0: i32, %arg1: i32) -> (i32, i32, i32) {
    %c0_i32 = arith.constant 0 : i32
    %c0_i32_0 = arith.constant 0 : i32
    %c0_i32_1 = arith.constant 0 : i32
    return %arg1, %c0_i32, %c0_i32_0 : i32, i32, i32
  }
  func.func @transform_1(%arg0: i32, %arg1: i32) -> (i32, i32) {
    %c0_i32 = arith.constant 0 : i32
    %c0_i32_0 = arith.constant 0 : i32
    %c0_i32_1 = arith.constant 0 : i32
    return %c0_i32, %c0_i32_0 : i32, i32
  }
  func.func @transform_2(%arg0: i32, %arg1: i32) -> (i32, i32, i32) {
    %c0_i32 = arith.constant 0 : i32
    %c0_i32_0 = arith.constant 0 : i32
    %c0_i32_1 = arith.constant 0 : i32
    return %arg1, %c0_i32, %c0_i32_0 : i32, i32, i32
  }
  func.func @transform_3(%arg0: i32, %arg1: i32) -> (i32, i32, i32) {
    %c0_i32 = arith.constant 0 : i32
    %c0_i32_0 = arith.constant 0 : i32
    %c0_i32_1 = arith.constant 0 : i32
    %c0_i32_2 = arith.constant 0 : i32
    return %c0_i32, %c0_i32_0, %c0_i32_1 : i32, i32, i32
  }
  func.func @transform_4(%arg0: i32, %arg1: i32) -> (i32, i32) {
    %c0_i32 = arith.constant 0 : i32
    %c0_i32_0 = arith.constant 0 : i32
    %c0_i32_1 = arith.constant 0 : i32
    return %c0_i32, %c0_i32_0 : i32, i32
  }
  func.func @transform_5(%arg0: i32, %arg1: i32) -> (i32, i32) {
    %c0_i32 = arith.constant 0 : i32
    %c0_i32_0 = arith.constant 0 : i32
    %c0_i32_1 = arith.constant 0 : i32
    return %c0_i32, %c0_i32_0 : i32, i32
  }
  func.func @transform_6(%arg0: i32, %arg1: i32) -> (i32, i32) {
    %c0_i32 = arith.constant 0 : i32
    %c0_i32_0 = arith.constant 0 : i32
    %c0_i32_1 = arith.constant 0 : i32
    return %c0_i32, %c0_i32_0 : i32, i32
  }
  func.func @transform_7(%arg0: i32, %arg1: i32) -> (i32, i32) {
    %c0_i32 = arith.constant 0 : i32
    %c0_i32_0 = arith.constant 0 : i32
    %c0_i32_1 = arith.constant 0 : i32
    return %c0_i32, %c0_i32_0 : i32, i32
  }
  func.func @transform_8(%arg0: i32, %arg1: i32) -> (i32, i32, i32) {
    %0 = arith.muli %arg0, %arg1 : i32
    %c0_i32 = arith.constant 0 : i32
    %c0_i32_0 = arith.constant 0 : i32
    %c0_i32_1 = arith.constant 0 : i32
    return %0, %c0_i32, %c0_i32_0 : i32, i32, i32
  }
}

</mosaic_0001>

<llo_original>
// kernel: tpu_custom_call.1
$region0: #{tpu_custom_call.1}
  #allocation0 [shape = 'u32[]', space=smem, size = 0x4, offset = 0x4, fixed_abs, tag = 'smem constant byte address 0x4 - core index']
  #allocation1 [shape = 'u32[144,128]{1,0:T(1,128)}', space=vmem, size = 0x12000, scoped, tag = 'internal scratch']
  #allocation2 [shape = 'f32[8,256]{1,0:T(8,128)}', space=vmem, size = 0x2000, scoped, tag = 'scratch operand']
  #allocation3 [shape = 'f32[8,256]{1,0:T(8,128)}', space=vmem, size = 0x2000, scoped, tag = 'scratch operand']
  %s0 = inlined_call_operand.vmem [shape: f32[2,8,256], index: 0, kind: input, shape index: {}]
  %s1 = inlined_call_operand.hbm [shape: f32[256,256], index: 1, kind: input, shape index: {}]
  %s2 = inlined_call_operand.vmem [shape: f32[2,10,256], index: 2, kind: input, shape index: {}]
  %s3 = inlined_call_operand.hbm [shape: f32[3,256,256], index: 3, kind: input, shape index: {}]
  %s4 = inlined_call_operand.hbm [shape: f32[256,256], index: 4, kind: input, shape index: {}]
  %s5 = inlined_call_operand.vmem [shape: f32[1,256], index: 5, kind: input, shape index: {}]
  %s6 = inlined_call_operand.vmem [shape: f32[1,256], index: 6, kind: input, shape index: {}]
  %s7 = inlined_call_operand.vmem [shape: f32[1,256], index: 7, kind: input, shape index: {}]
  %s8 = inlined_call_operand.hbm [shape: f32[2,8,256], index: 8, kind: output, shape index: {}]
  %s9 = sld [smem:[#allocation0]]
  $region93: #{tpu_custom_call.1} parent=0
    _
  %s11 = ssub.s32 1, %s9
  %s12 = scalar_select 0, %s11, %s9
  $region1: #{tpu_custom_call.1} parent=0
    #allocation4 [shape = 'u8[262144]{0}', space=vmem, size = 0x40000, scoped, tag = 'input window, operand 1, single buffered']
    #allocation5 [shape = 's32[2]{0}', space=sflag, size = 0x8, scoped, tag = 'scoped memory for tpu_custom_call.1']
    #allocation6 [shape = 's32[2]{0}', space=sflag, size = 0x8, scoped, tag = 'scoped memory for tpu_custom_call.1']
    #allocation7 [shape = 'u8[786432]{0}', space=vmem, size = 0xc0000, scoped, tag = 'input window, operand 3, single buffered']
    #allocation8 [shape = 's32[1]{0}', space=sflag, size = 0x4, scoped, tag = 'scoped memory for tpu_custom_call.1']
    #allocation9 [shape = 'u8[262144]{0}', space=vmem, size = 0x40000, scoped, tag = 'input window, operand 4, single buffered']
    #allocation10 [shape = 'u8[16384]{0}', space=vmem, size = 0x4000, scoped, tag = 'output window, operand 0']
    %13 = vsyncpa [#allocation5], 0
    %14 = vsyncpa [#allocation8], 0
    %15 = vsyncpa [#allocation6], 0
    %s16 = scalar_lea.sflag [#allocation6], 1
    %17 = vsyncpa %s16, 0
    loop: start=0, step=1, limit=6
    $region2: #{tpu_custom_call.1} parent=1 // loop_pre_header
      _
    $region3: #{tpu_custom_call.1} parent=1 // loop_header
      %s19 = sphi 0, %s23
      %p20 = scmp.ge.s32.totalorder %s19, 6
      %s26 = sphi 0, %s38
      %s27 = sphi 0, %s34
      %s28 = sphi 0, %s26
      %s29 = sphi 0, %s27
      %s30 = sphi 0, %s28
      %s31 = sphi 0, %s29
      %s41 = sphi 0, %s43
      %s44 = sphi 0, %s41
      %s45 = sphi 0, %s44
      %s61 = sphi 0, %s45
      %s65 = sphi 0, %s65
      %s67 = sphi 0, %s65
      %s68 = sphi 0, %s67
      %s82 = sphi 0, %s68
      %s88 = sphi 0, %s90
      %s91 = sphi 0, %s88
      %s92 = sphi 0, %s91
      %s108 = sphi 0, %s92
      %s112 = sphi 0, %s112
      %s114 = sphi 0, %s112
      %s115 = sphi 0, %s114
      %s129 = sphi 0, %s115
      %s133 = sphi 0, %s133
      %s135 = sphi 0, %s133
      %s136 = sphi 0, %s135
      %s150 = sphi 0, %s136
      %s154 = sphi 0, %s154
      %s156 = sphi 0, %s154
      %s157 = sphi 0, %s156
      %s171 = sphi 0, %s157
      %s175 = sphi 0, %s175
      %s177 = sphi 0, %s175
      %s178 = sphi 0, %s177
      %s192 = sphi 0, %s178
      %s196 = sphi 0, %s196
      %s198 = sphi 0, %s196
      %s199 = sphi 0, %s198
      %s213 = sphi 0, %s199
      %s221 = sphi 0, %s223
      %s224 = sphi 0, %s221
      %s225 = sphi 0, %s224
      %s241 = sphi 0, %s225
    $region4: #{tpu_custom_call.1} parent=1 // loop_header_branch
      %22 = sbr.rel (%p20) target = $region8
    $region5: #{tpu_custom_call.1} parent=1 // loop_body
      %s24 = ssub.s32 %s19, 1
      %s25 = ssub.s32 %s19, 2
      %s32 = sadd.s32 1, %s27
      %p33 = scmp.ge.s32.totalorder %s32, 2
      %s34 = scalar_select %p33, 0, %s32
      %s35 = sadd.s32 1, %s26
      %s36 = scalar_select %p33, %s35, %s26
      %p37 = scmp.ge.s32.totalorder %s36, 2
      %s38 = scalar_select %p37, 0, %s36
      %s39 = ssub.s32 %s27, %s34
      %p40 = scmp.eq.s32.totalorder %s39, 0
      %s42 = sadd.s32 %s41, 1
      %s43 = scalar_select %p40, %s41, %s42
      %p46 = pneg %p40
      %p47 = scmp.eq.s32.totalorder %s19, 3
      %p48 = por %p46, %p47
      %p49 = scmp.ne.s32.totalorder %s41, %s44
      %p50 = scmp.eq.s32.totalorder %s19, 0
      %p51 = por %p49, %p50
      %p52 = scmp.ne.s32.totalorder %s41, %s44
      %p53 = scmp.eq.s32.totalorder %s24, 3
      %p54 = por %p52, %p53
      %p55 = scmp.ne.s32.totalorder %s44, %s45
      %p56 = scmp.eq.s32.totalorder %s24, 0
      %p57 = por %p55, %p56
      %p58 = scmp.ne.s32.totalorder %s44, %s45
      %p59 = scmp.eq.s32.totalorder %s25, 3
      %p60 = por %p58, %p59
      %p62 = scmp.ne.s32.totalorder %s45, %s61
      %p63 = scmp.eq.s32.totalorder %s25, 0
      %p64 = por %p62, %p63
      %s66 = sadd.s32 %s65, 1
      %p69 = scmp.eq.s32.totalorder %s19, 3
      %p70 = scmp.ne.s32.totalorder %s65, %s67
      %p71 = scmp.eq.s32.totalorder %s19, 0
      %p72 = por %p70, %p71
      %p73 = scmp.ne.s32.totalorder %s65, %s67
      %p74 = scmp.eq.s32.totalorder %s24, 3
      %p75 = por %p73, %p74
      %p76 = scmp.ne.s32.totalorder %s67, %s68
      %p77 = scmp.eq.s32.totalorder %s24, 0
      %p78 = por %p76, %p77
      %p79 = scmp.ne.s32.totalorder %s67, %s68
      %p80 = scmp.eq.s32.totalorder %s25, 3
      %p81 = por %p79, %p80
      %p83 = scmp.ne.s32.totalorder %s68, %s82
      %p84 = scmp.eq.s32.totalorder %s25, 0
      %p85 = por %p83, %p84
      %s86 = ssub.s32 %s27, %s34
      %p87 = scmp.eq.s32.totalorder %s86, 0
      %s89 = sadd.s32 %s88, 1
      %s90 = scalar_select %p87, %s88, %s89
      %p93 = pneg %p87
      %p94 = scmp.eq.s32.totalorder %s19, 3
      %p95 = por %p93, %p94
      %p96 = scmp.ne.s32.totalorder %s88, %s91
      %p97 = scmp.eq.s32.totalorder %s19, 0
      %p98 = por %p96, %p97
      %p99 = scmp.ne.s32.totalorder %s88, %s91
      %p100 = scmp.eq.s32.totalorder %s24, 3
      %p101 = por %p99, %p100
      %p102 = scmp.ne.s32.totalorder %s91, %s92
      %p103 = scmp.eq.s32.totalorder %s24, 0
      %p104 = por %p102, %p103
      %p105 = scmp.ne.s32.totalorder %s91, %s92
      %p106 = scmp.eq.s32.totalorder %s25, 3
      %p107 = por %p105, %p106
      %p109 = scmp.ne.s32.totalorder %s92, %s108
      %p110 = scmp.eq.s32.totalorder %s25, 0
      %p111 = por %p109, %p110
      %s113 = sadd.s32 %s112, 1
      %p116 = scmp.eq.s32.totalorder %s19, 3
      %p117 = scmp.ne.s32.totalorder %s112, %s114
      %p118 = scmp.eq.s32.totalorder %s19, 0
      %p119 = por %p117, %p118
      %p120 = scmp.ne.s32.totalorder %s112, %s114
      %p121 = scmp.eq.s32.totalorder %s24, 3
      %p122 = por %p120, %p121
      %p123 = scmp.ne.s32.totalorder %s114, %s115
      %p124 = scmp.eq.s32.totalorder %s24, 0
      %p125 = por %p123, %p124
      %p126 = scmp.ne.s32.totalorder %s114, %s115
      %p127 = scmp.eq.s32.totalorder %s25, 3
      %p128 = por %p126, %p127
      %p130 = scmp.ne.s32.totalorder %s115, %s129
      %p131 = scmp.eq.s32.totalorder %s25, 0
      %p132 = por %p130, %p131
      %s134 = sadd.s32 %s133, 1
      %p137 = scmp.eq.s32.totalorder %s19, 3
      %p138 = scmp.ne.s32.totalorder %s133, %s135
      %p139 = scmp.eq.s32.totalorder %s19, 0
      %p140 = por %p138, %p139
      %p141 = scmp.ne.s32.totalorder %s133, %s135
      %p142 = scmp.eq.s32.totalorder %s24, 3
      %p143 = por %p141, %p142
      %p144 = scmp.ne.s32.totalorder %s135, %s136
      %p145 = scmp.eq.s32.totalorder %s24, 0
      %p146 = por %p144, %p145
      %p147 = scmp.ne.s32.totalorder %s135, %s136
      %p148 = scmp.eq.s32.totalorder %s25, 3
      %p149 = por %p147, %p148
      %p151 = scmp.ne.s32.totalorder %s136, %s150
      %p152 = scmp.eq.s32.totalorder %s25, 0
      %p153 = por %p151, %p152
      %s155 = sadd.s32 %s154, 1
      %p158 = scmp.eq.s32.totalorder %s19, 3
      %p159 = scmp.ne.s32.totalorder %s154, %s156
      %p160 = scmp.eq.s32.totalorder %s19, 0
      %p161 = por %p159, %p160
      %p162 = scmp.ne.s32.totalorder %s154, %s156
      %p163 = scmp.eq.s32.totalorder %s24, 3
      %p164 = por %p162, %p163
      %p165 = scmp.ne.s32.totalorder %s156, %s157
      %p166 = scmp.eq.s32.totalorder %s24, 0
      %p167 = por %p165, %p166
      %p168 = scmp.ne.s32.totalorder %s156, %s157
      %p169 = scmp.eq.s32.totalorder %s25, 3
      %p170 = por %p168, %p169
      %p172 = scmp.ne.s32.totalorder %s157, %s171
      %p173 = scmp.eq.s32.totalorder %s25, 0
      %p174 = por %p172, %p173
      %s176 = sadd.s32 %s175, 1
      %p179 = scmp.eq.s32.totalorder %s19, 3
      %p180 = scmp.ne.s32.totalorder %s175, %s177
      %p181 = scmp.eq.s32.totalorder %s19, 0
      %p182 = por %p180, %p181
      %p183 = scmp.ne.s32.totalorder %s175, %s177
      %p184 = scmp.eq.s32.totalorder %s24, 3
      %p185 = por %p183, %p184
      %p186 = scmp.ne.s32.totalorder %s177, %s178
      %p187 = scmp.eq.s32.totalorder %s24, 0
      %p188 = por %p186, %p187
      %p189 = scmp.ne.s32.totalorder %s177, %s178
      %p190 = scmp.eq.s32.totalorder %s25, 3
      %p191 = por %p189, %p190
      %p193 = scmp.ne.s32.totalorder %s178, %s192
      %p194 = scmp.eq.s32.totalorder %s25, 0
      %p195 = por %p193, %p194
      %s197 = sadd.s32 %s196, 1
      %p200 = scmp.eq.s32.totalorder %s19, 3
      %p201 = scmp.ne.s32.totalorder %s196, %s198
      %p202 = scmp.eq.s32.totalorder %s19, 0
      %p203 = por %p201, %p202
      %p204 = scmp.ne.s32.totalorder %s196, %s198
      %p205 = scmp.eq.s32.totalorder %s24, 3
      %p206 = por %p204, %p205
      %p207 = scmp.ne.s32.totalorder %s198, %s199
      %p208 = scmp.eq.s32.totalorder %s24, 0
      %p209 = por %p207, %p208
      %p210 = scmp.ne.s32.totalorder %s198, %s199
      %p211 = scmp.eq.s32.totalorder %s25, 3
      %p212 = por %p210, %p211
      %p214 = scmp.ne.s32.totalorder %s199, %s213
      %p215 = scmp.eq.s32.totalorder %s25, 0
      %p216 = por %p214, %p215
      %s217 = smul.u32 %s26, %s27
      %s218 = smul.u32 %s38, %s34
      %s219 = ssub.s32 %s217, %s218
      %p220 = scmp.eq.s32.totalorder %s219, 0
      %s222 = sadd.s32 %s221, 1
      %s223 = scalar_select %p220, %s221, %s222
      %p226 = pneg %p220
      %p227 = scmp.eq.s32.totalorder %s19, 3
      %p228 = por %p226, %p227
      %p229 = scmp.ne.s32.totalorder %s221, %s224
      %p230 = scmp.eq.s32.totalorder %s19, 0
      %p231 = por %p229, %p230
      %p232 = scmp.ne.s32.totalorder %s221, %s224
      %p233 = scmp.eq.s32.totalorder %s24, 3
      %p234 = por %p232, %p233
      %p235 = scmp.ne.s32.totalorder %s224, %s225
      %p236 = scmp.eq.s32.totalorder %s24, 0
      %p237 = por %p235, %p236
      %p238 = scmp.ne.s32.totalorder %s224, %s225
      %p239 = scmp.eq.s32.totalorder %s25, 3
      %p240 = por %p238, %p239
      %p242 = scmp.ne.s32.totalorder %s225, %s241
      %p243 = scmp.eq.s32.totalorder %s25, 0
      %p244 = por %p242, %p243
      %p245 = scmp.le.s32.totalorder 1, %s19
      %p246 = scmp.lt.s32.totalorder %s19, 5
      %p247 = pnand %p245, %p246
      %p248 = pneg %p247
      // Predicated region
      $region9: #{tpu_custom_call.1} parent=5 // pred_check
        _
      $region10: #{tpu_custom_call.1} parent=5 // pred_check_branch
        %250 = sbr.rel (%p247) target = $region12
      $region11: #{tpu_custom_call.1} parent=5 // pred_region
        %s251 = ssub.s32 %s19, 1
        // Predicated region
        $region13: #{tpu_custom_call.1} parent=11 // pred_check
          %p252 = pneg %p78
        $region14: #{tpu_custom_call.1} parent=11 // pred_check_branch
          %254 = sbr.rel (%p252) target = $region16
        $region15: #{tpu_custom_call.1} parent=11 // pred_region
          %s256 = ssub.s32 8192, 8192
          %257 = vsyncadd [#allocation5], %s256
          %s258 = sshll.u32 [#allocation4], 4
          %s259 = int_to_ptr.vmem [resolvable:$true] %s258
          %264 = dma.hbm_to_vmem [thread:$0]  %s1, 8192, %s259, [#allocation5], 256, 256, 16
        $region16: #{tpu_custom_call.1} parent=11 // pred_fallthru
          _
        // Predicated region
        $region17: #{tpu_custom_call.1} parent=11 // pred_check
          %p265 = pneg %p125
        $region18: #{tpu_custom_call.1} parent=11 // pred_check_branch
          %267 = sbr.rel (%p265) target = $region20
        $region19: #{tpu_custom_call.1} parent=11 // pred_region
          %s269 = ssub.s32 24576, 24576
          %270 = vsyncadd [#allocation8], %s269
          %s271 = sshll.u32 [#allocation7], 4
          %s272 = int_to_ptr.vmem [resolvable:$true] %s271
          %277 = dma.hbm_to_vmem [thread:$0]  %s3, 24576, %s272, [#allocation8], 256, 256, 16
        $region20: #{tpu_custom_call.1} parent=11 // pred_fallthru
          _
        // Predicated region
        $region21: #{tpu_custom_call.1} parent=11 // pred_check
          %p278 = pneg %p146
        $region22: #{tpu_custom_call.1} parent=11 // pred_check_branch
          %280 = sbr.rel (%p278) target = $region24
        $region23: #{tpu_custom_call.1} parent=11 // pred_region
          %s282 = ssub.s32 8192, 8192
          %283 = vsyncadd [#allocation8], %s282
          %s284 = sshll.u32 [#allocation9], 4
          %s285 = int_to_ptr.vmem [resolvable:$true] %s284
          %290 = dma.hbm_to_vmem [thread:$0]  %s4, 8192, %s285, [#allocation8], 256, 256, 16
        $region24: #{tpu_custom_call.1} parent=11 // pred_fallthru
          _
        // Predicated region
        $region25: #{tpu_custom_call.1} parent=11 // pred_check
          %p291 = pneg %p167
        $region26: #{tpu_custom_call.1} parent=11 // pred_check_branch
          %293 = sbr.rel (%p291) target = $region28
        $region27: #{tpu_custom_call.1} parent=11 // pred_region
          _
        $region28: #{tpu_custom_call.1} parent=11 // pred_fallthru
          _
        // Predicated region
        $region29: #{tpu_custom_call.1} parent=11 // pred_check
          %p294 = pneg %p188
        $region30: #{tpu_custom_call.1} parent=11 // pred_check_branch
          %296 = sbr.rel (%p294) target = $region32
        $region31: #{tpu_custom_call.1} parent=11 // pred_region
          _
        $region32: #{tpu_custom_call.1} parent=11 // pred_fallthru
          _
        // Predicated region
        $region33: #{tpu_custom_call.1} parent=11 // pred_check
          %p297 = pneg %p209
        $region34: #{tpu_custom_call.1} parent=11 // pred_check_branch
          %299 = sbr.rel (%p297) target = $region36
        $region35: #{tpu_custom_call.1} parent=11 // pred_region
          _
        $region36: #{tpu_custom_call.1} parent=11 // pred_fallthru
          _
      $region12: #{tpu_custom_call.1} parent=5 // pred_fallthru
        _
      %p300 = scmp.lt.s32.totalorder %s19, 4
      // Predicated region
      $region37: #{tpu_custom_call.1} parent=5 // pred_check
        %p301 = pneg %p300
      $region38: #{tpu_custom_call.1} parent=5 // pred_check_branch
        %303 = sbr.rel (%p301) target = $region40
      $region39: #{tpu_custom_call.1} parent=5 // pred_region
        // Predicated region
        $region41: #{tpu_custom_call.1} parent=39 // pred_check
          %p304 = pneg %p51
        $region42: #{tpu_custom_call.1} parent=39 // pred_check_branch
          %306 = sbr.rel (%p304) target = $region44
        $region43: #{tpu_custom_call.1} parent=39 // pred_region
          %p307 = scmp.lt.s32.totalorder %s27, 1
          %s308 = scalar_select %p307, %s27, 1
          %s309 = smul.addr %s308, 2
          %s310 = smul.addr %s309, 8
          %s311 = scalar_lea.vmem %s0, %s310
        $region44: #{tpu_custom_call.1} parent=39 // pred_fallthru
          _
        // Predicated region
        $region45: #{tpu_custom_call.1} parent=39 // pred_check
          %p312 = pneg %p98
        $region46: #{tpu_custom_call.1} parent=39 // pred_check_branch
          %314 = sbr.rel (%p312) target = $region48
        $region47: #{tpu_custom_call.1} parent=39 // pred_region
          %p315 = scmp.lt.s32.totalorder %s27, 1
          %s316 = scalar_select %p315, %s27, 1
          %s317 = smul.addr %s316, 4
          %s318 = smul.addr %s317, 8
          %s319 = scalar_lea.vmem %s2, %s318
        $region48: #{tpu_custom_call.1} parent=39 // pred_fallthru
          _
      $region40: #{tpu_custom_call.1} parent=5 // pred_fallthru
        _
      %p320 = scmp.le.s32.totalorder 1, %s19
      %p321 = scmp.lt.s32.totalorder %s19, 5
      %p322 = pnand %p320, %p321
      %p323 = pneg %p322
      // Predicated region
      $region49: #{tpu_custom_call.1} parent=5 // pred_check
        _
      $region50: #{tpu_custom_call.1} parent=5 // pred_check_branch
        %325 = sbr.rel (%p322) target = $region52
      $region51: #{tpu_custom_call.1} parent=5 // pred_region
        %s326 = ssub.s32 %s19, 1
        // Predicated region
        $region53: #{tpu_custom_call.1} parent=51 // pred_check
          %p327 = pneg %p78
        $region54: #{tpu_custom_call.1} parent=51 // pred_check_branch
          %329 = sbr.rel (%p327) target = $region56
        $region55: #{tpu_custom_call.1} parent=51 // pred_region
          %330 = dma.done [#allocation5], 8192
        $region56: #{tpu_custom_call.1} parent=51 // pred_fallthru
          _
        // Predicated region
        $region57: #{tpu_custom_call.1} parent=51 // pred_check
          %p331 = pneg %p125
        $region58: #{tpu_custom_call.1} parent=51 // pred_check_branch
          %333 = sbr.rel (%p331) target = $region60
        $region59: #{tpu_custom_call.1} parent=51 // pred_region
          %334 = dma.done [#allocation8], 24576
        $region60: #{tpu_custom_call.1} parent=51 // pred_fallthru
          _
        // Predicated region
        $region61: #{tpu_custom_call.1} parent=51 // pred_check
          %p335 = pneg %p146
        $region62: #{tpu_custom_call.1} parent=51 // pred_check_branch
          %337 = sbr.rel (%p335) target = $region64
        $region63: #{tpu_custom_call.1} parent=51 // pred_region
          %338 = dma.done [#allocation8], 8192
        $region64: #{tpu_custom_call.1} parent=51 // pred_fallthru
          _
        %p339 = scmp.lt.s32.totalorder %s29, 1
        %s340 = scalar_select %p339, %s29, 1
        %s341 = smul.addr %s340, 2
        %s342 = smul.addr %s341, 8
        %s343 = scalar_lea.vmem %s0, %s342
        %p344 = pneg %p57
        %p345 = pneg %p54
        %p346 = pneg %p78
        %p347 = pneg %p75
        %p348 = scmp.lt.s32.totalorder %s29, 1
        %s349 = scalar_select %p348, %s29, 1
        %s350 = smul.addr %s349, 4
        %s351 = smul.addr %s350, 8
        %s352 = scalar_lea.vmem %s2, %s351
        %p353 = pneg %p104
        %p354 = pneg %p101
        %p355 = pneg %p125
        %p356 = pneg %p122
        %p357 = pneg %p146
        %p358 = pneg %p143
        %p359 = pneg %p167
        %p360 = pneg %p164
        %p361 = pneg %p188
        %p362 = pneg %p185
        %p363 = pneg %p209
        %p364 = pneg %p206
        %p365 = pneg %p237
        %p366 = pneg %p234
        %s367 = sand.u32 %s224, 1
        %s368 = scalar_lea.sflag [#allocation6], %s367
        %s369 = sand.u32 %s224, 1
        %s370 = smul.addr %s369, 16
        %s371 = scalar_lea.vmem [#allocation10], %s370
        %p372 = scmp.lt.s32.totalorder %s29, 1
        %s373 = scalar_select %p372, %s29, 1
        %s374 = smul.addr %s373, 2
        %s375 = smul.addr %s374, 8
        %s376 = scalar_lea.vmem %s0, %s375
        %p377 = scmp.lt.s32.totalorder %s29, 1
        %s378 = scalar_select %p377, %s29, 1
        %s379 = smul.addr %s378, 4
        %s380 = smul.addr %s379, 8
        %s381 = scalar_lea.vmem %s2, %s380
        %s382 = smul.u32 %s28, %s29
        %v383 = vld [vmem:[%s376] sm:$0xff]
        %v384 = vld [vmem:[%s376 + $0x8] sm:$0xff]
        %v385 = vld [vmem:[#allocation4] sm:$0xff]
        %v386 = vld [vmem:[#allocation4 + $0x8] sm:$0xff]
        %v387 = vld [vmem:[#allocation4 + $0x10] sm:$0xff]
        %v388 = vld [vmem:[#allocation4 + $0x18] sm:$0xff]
        %v389 = vld [vmem:[#allocation4 + $0x20] sm:$0xff]
        %v390 = vld [vmem:[#allocation4 + $0x28] sm:$0xff]
        %v391 = vld [vmem:[#allocation4 + $0x30] sm:$0xff]
        %v392 = vld [vmem:[#allocation4 + $0x38] sm:$0xff]
        %v393 = vld [vmem:[#allocation4 + $0x40] sm:$0xff]
        %v394 = vld [vmem:[#allocation4 + $0x48] sm:$0xff]
        %v395 = vld [vmem:[#allocation4 + $0x50] sm:$0xff]
        %v396 = vld [vmem:[#allocation4 + $0x58] sm:$0xff]
        %v397 = vld [vmem:[#allocation4 + $0x60] sm:$0xff]
        %v398 = vld [vmem:[#allocation4 + $0x68] sm:$0xff]
        %v399 = vld [vmem:[#allocation4 + $0x70] sm:$0xff]
        %v400 = vld [vmem:[#allocation4 + $0x78] sm:$0xff]
        %v401 = vld [vmem:[#allocation4 + $0x80] sm:$0xff]
        %v402 = vld [vmem:[#allocation4 + $0x88] sm:$0xff]
        %v403 = vld [vmem:[#allocation4 + $0x90] sm:$0xff]
        %v404 = vld [vmem:[#allocation4 + $0x98] sm:$0xff]
        %v405 = vld [vmem:[#allocation4 + $0xa0] sm:$0xff]
        %v406 = vld [vmem:[#allocation4 + $0xa8] sm:$0xff]
        %v407 = vld [vmem:[#allocation4 + $0xb0] sm:$0xff]
        %v408 = vld [vmem:[#allocation4 + $0xb8] sm:$0xff]
        %v409 = vld [vmem:[#allocation4 + $0xc0] sm:$0xff]
        %v410 = vld [vmem:[#allocation4 + $0xc8] sm:$0xff]
        %v411 = vld [vmem:[#allocation4 + $0xd0] sm:$0xff]
        %v412 = vld [vmem:[#allocation4 + $0xd8] sm:$0xff]
        %v413 = vld [vmem:[#allocation4 + $0xe0] sm:$0xff]
        %v414 = vld [vmem:[#allocation4 + $0xe8] sm:$0xff]
        %v415 = vld [vmem:[#allocation4 + $0xf0] sm:$0xff]
        %v416 = vld [vmem:[#allocation4 + $0xf8] sm:$0xff]
        %v417 = vld [vmem:[#allocation4 + $0x100] sm:$0xff]
        %v418 = vld [vmem:[#allocation4 + $0x108] sm:$0xff]
        %v419 = vld [vmem:[#allocation4 + $0x110] sm:$0xff]
        %v420 = vld [vmem:[#allocation4 + $0x118] sm:$0xff]
        %v421 = vld [vmem:[#allocation4 + $0x120] sm:$0xff]
        %v422 = vld [vmem:[#allocation4 + $0x128] sm:$0xff]
        %v423 = vld [vmem:[#allocation4 + $0x130] sm:$0xff]
        %v424 = vld [vmem:[#allocation4 + $0x138] sm:$0xff]
        %v425 = vld [vmem:[#allocation4 + $0x140] sm:$0xff]
        %v426 = vld [vmem:[#allocation4 + $0x148] sm:$0xff]
        %v427 = vld [vmem:[#allocation4 + $0x150] sm:$0xff]
        %v428 = vld [vmem:[#allocation4 + $0x158] sm:$0xff]
        %v429 = vld [vmem:[#allocation4 + $0x160] sm:$0xff]
        %v430 = vld [vmem:[#allocation4 + $0x168] sm:$0xff]
        %v431 = vld [vmem:[#allocation4 + $0x170] sm:$0xff]
        %v432 = vld [vmem:[#allocation4 + $0x178] sm:$0xff]
        %v433 = vld [vmem:[#allocation4 + $0x180] sm:$0xff]
        %v434 = vld [vmem:[#allocation4 + $0x188] sm:$0xff]
        %v435 = vld [vmem:[#allocation4 + $0x190] sm:$0xff]
        %v436 = vld [vmem:[#allocation4 + $0x198] sm:$0xff]
        %v437 = vld [vmem:[#allocation4 + $0x1a0] sm:$0xff]
        %v438 = vld [vmem:[#allocation4 + $0x1a8] sm:$0xff]
        %v439 = vld [vmem:[#allocation4 + $0x1b0] sm:$0xff]
        %v440 = vld [vmem:[#allocation4 + $0x1b8] sm:$0xff]
        %v441 = vld [vmem:[#allocation4 + $0x1c0] sm:$0xff]
        %v442 = vld [vmem:[#allocation4 + $0x1c8] sm:$0xff]
        %v443 = vld [vmem:[#allocation4 + $0x1d0] sm:$0xff]
        %v444 = vld [vmem:[#allocation4 + $0x1d8] sm:$0xff]
        %v445 = vld [vmem:[#allocation4 + $0x1e0] sm:$0xff]
        %v446 = vld [vmem:[#allocation4 + $0x1e8] sm:$0xff]
        %v447 = vld [vmem:[#allocation4 + $0x1f0] sm:$0xff]
        %v448 = vld [vmem:[#allocation4 + $0x1f8] sm:$0xff]
        %449 = vmatprep.subr.mxu0 %v386
        %450 = vmatpush1.msra.mxu0 %v385
        %451 = vmatprep.subr.mxu0 %v388
        %452 = vmatpush1.msra.mxu0 %v387
        %453 = vmatprep.subr.mxu0 %v390
        %454 = vmatpush1.msra.mxu0 %v389
        %455 = vmatprep.subr.mxu0 %v392
        %456 = vmatpush1.msra.mxu0 %v391
        %457 = vmatprep.subr.mxu0 %v394
        %458 = vmatpush1.msra.mxu0 %v393
        %459 = vmatprep.subr.mxu0 %v396
        %460 = vmatpush1.msra.mxu0 %v395
        %461 = vmatprep.subr.mxu0 %v398
        %462 = vmatpush1.msra.mxu0 %v397
        %463 = vmatprep.subr.mxu0 %v400
        %464 = vmatpush1.msra.mxu0 %v399
        %465 = vmatprep.subr.mxu0 %v402
        %466 = vmatpush1.msra.mxu0 %v401
        %467 = vmatprep.subr.mxu0 %v404
        %468 = vmatpush1.msra.mxu0 %v403
        %469 = vmatprep.subr.mxu0 %v406
        %470 = vmatpush1.msra.mxu0 %v405
        %471 = vmatprep.subr.mxu0 %v408
        %472 = vmatpush1.msra.mxu0 %v407
        %473 = vmatprep.subr.mxu0 %v410
        %474 = vmatpush1.msra.mxu0 %v409
        %475 = vmatprep.subr.mxu0 %v412
        %476 = vmatpush1.msra.mxu0 %v411
        %477 = vmatprep.subr.mxu0 %v414
        %478 = vmatpush1.msra.mxu0 %v413
        %479 = vmatprep.subr.mxu0 %v416
        %480 = vmatpush1.msra.mxu0 %v415
        %481 = vmatprep.subr.mxu0 %v418
        %482 = vmatpush1.msra.mxu0 %v417
        %483 = vmatprep.subr.mxu0 %v420
        %484 = vmatpush1.msra.mxu0 %v419
        %485 = vmatprep.subr.mxu0 %v422
        %486 = vmatpush1.msra.mxu0 %v421
        %487 = vmatprep.subr.mxu0 %v424
        %488 = vmatpush1.msra.mxu0 %v423
        %489 = vmatprep.subr.mxu0 %v426
        %490 = vmatpush1.msra.mxu0 %v425
        %491 = vmatprep.subr.mxu0 %v428
        %492 = vmatpush1.msra.mxu0 %v427
        %493 = vmatprep.subr.mxu0 %v430
        %494 = vmatpush1.msra.mxu0 %v429
        %495 = vmatprep.subr.mxu0 %v432
        %496 = vmatpush1.msra.mxu0 %v431
        %497 = vmatprep.subr.mxu0 %v434
        %498 = vmatpush1.msra.mxu0 %v433
        %499 = vmatprep.subr.mxu0 %v436
        %500 = vmatpush1.msra.mxu0 %v435
        %501 = vmatprep.subr.mxu0 %v438
        %502 = vmatpush1.msra.mxu0 %v437
        %503 = vmatprep.subr.mxu0 %v440
        %504 = vmatpush1.msra.mxu0 %v439
        %505 = vmatprep.subr.mxu0 %v442
        %506 = vmatpush1.msra.mxu0 %v441
        %507 = vmatprep.subr.mxu0 %v444
        %508 = vmatpush1.msra.mxu0 %v443
        %509 = vmatprep.subr.mxu0 %v446
        %510 = vmatpush1.msra.mxu0 %v445
        %511 = vmatprep.subr.mxu0 %v448
        %512 = vmatpush1.msra.mxu0 %v447
        %513 = vmatprep.mubr.f32.mxu0 %v384
        %514 = vmatmul.mubr.f32.gmra.mrb[0].mxu0 %v383
        %v515 = vpop.f32.mrb[0].mxu0
        %v516 = vadd.f32 0.0, %v515
        %v517 = vpop.f32.mrb[0].mxu0
        %v518 = vadd.f32 0.0, %v517
        %519 = vdwg.mxu0
        %v520 = vld [vmem:[%s381] sm:$0xff]
        %v521 = vld [vmem:[%s381 + $0x8] sm:$0xff]
        %v522 = vld [vmem:[#allocation7] sm:$0xff]
        %v523 = vld [vmem:[#allocation7 + $0x8] sm:$0xff]
        %v524 = vld [vmem:[#allocation7 + $0x10] sm:$0xff]
        %v525 = vld [vmem:[#allocation7 + $0x18] sm:$0xff]
        %v526 = vld [vmem:[#allocation7 + $0x20] sm:$0xff]
        %v527 = vld [vmem:[#allocation7 + $0x28] sm:$0xff]
        %v528 = vld [vmem:[#allocation7 + $0x30] sm:$0xff]
        %v529 = vld [vmem:[#allocation7 + $0x38] sm:$0xff]
        %v530 = vld [vmem:[#allocation7 + $0x40] sm:$0xff]
        %v531 = vld [vmem:[#allocation7 + $0x48] sm:$0xff]
        %v532 = vld [vmem:[#allocation7 + $0x50] sm:$0xff]
        %v533 = vld [vmem:[#allocation7 + $0x58] sm:$0xff]
        %v534 = vld [vmem:[#allocation7 + $0x60] sm:$0xff]
        %v535 = vld [vmem:[#allocation7 + $0x68] sm:$0xff]
        %v536 = vld [vmem:[#allocation7 + $0x70] sm:$0xff]
        %v537 = vld [vmem:[#allocation7 + $0x78] sm:$0xff]
        %v538 = vld [vmem:[#allocation7 + $0x80] sm:$0xff]
        %v539 = vld [vmem:[#allocation7 + $0x88] sm:$0xff]
        %v540 = vld [vmem:[#allocation7 + $0x90] sm:$0xff]
        %v541 = vld [vmem:[#allocation7 + $0x98] sm:$0xff]
        %v542 = vld [vmem:[#allocation7 + $0xa0] sm:$0xff]
        %v543 = vld [vmem:[#allocation7 + $0xa8] sm:$0xff]
        %v544 = vld [vmem:[#allocation7 + $0xb0] sm:$0xff]
        %v545 = vld [vmem:[#allocation7 + $0xb8] sm:$0xff]
        %v546 = vld [vmem:[#allocation7 + $0xc0] sm:$0xff]
        %v547 = vld [vmem:[#allocation7 + $0xc8] sm:$0xff]
        %v548 = vld [vmem:[#allocation7 + $0xd0] sm:$0xff]
        %v549 = vld [vmem:[#allocation7 + $0xd8] sm:$0xff]
        %v550 = vld [vmem:[#allocation7 + $0xe0] sm:$0xff]
        %v551 = vld [vmem:[#allocation7 + $0xe8] sm:$0xff]
        %v552 = vld [vmem:[#allocation7 + $0xf0] sm:$0xff]
        %v553 = vld [vmem:[#allocation7 + $0xf8] sm:$0xff]
        %v554 = vld [vmem:[#allocation7 + $0x100] sm:$0xff]
        %v555 = vld [vmem:[#allocation7 + $0x108] sm:$0xff]
        %v556 = vld [vmem:[#allocation7 + $0x110] sm:$0xff]
        %v557 = vld [vmem:[#allocation7 + $0x118] sm:$0xff]
        %v558 = vld [vmem:[#allocation7 + $0x120] sm:$0xff]
        %v559 = vld [vmem:[#allocation7 + $0x128] sm:$0xff]
        %v560 = vld [vmem:[#allocation7 + $0x130] sm:$0xff]
        %v561 = vld [vmem:[#allocation7 + $0x138] sm:$0xff]
        %v562 = vld [vmem:[#allocation7 + $0x140] sm:$0xff]
        %v563 = vld [vmem:[#allocation7 + $0x148] sm:$0xff]
        %v564 = vld [vmem:[#allocation7 + $0x150] sm:$0xff]
        %v565 = vld [vmem:[#allocation7 + $0x158] sm:$0xff]
        %v566 = vld [vmem:[#allocation7 + $0x160] sm:$0xff]
        %v567 = vld [vmem:[#allocation7 + $0x168] sm:$0xff]
        %v568 = vld [vmem:[#allocation7 + $0x170] sm:$0xff]
        %v569 = vld [vmem:[#allocation7 + $0x178] sm:$0xff]
        %v570 = vld [vmem:[#allocation7 + $0x180] sm:$0xff]
        %v571 = vld [vmem:[#allocation7 + $0x188] sm:$0xff]
        %v572 = vld [vmem:[#allocation7 + $0x190] sm:$0xff]
        %v573 = vld [vmem:[#allocation7 + $0x198] sm:$0xff]
        %v574 = vld [vmem:[#allocation7 + $0x1a0] sm:$0xff]
        %v575 = vld [vmem:[#allocation7 + $0x1a8] sm:$0xff]
        %v576 = vld [vmem:[#allocation7 + $0x1b0] sm:$0xff]
        %v577 = vld [vmem:[#allocation7 + $0x1b8] sm:$0xff]
        %v578 = vld [vmem:[#allocation7 + $0x1c0] sm:$0xff]
        %v579 = vld [vmem:[#allocation7 + $0x1c8] sm:$0xff]
        %v580 = vld [vmem:[#allocation7 + $0x1d0] sm:$0xff]
        %v581 = vld [vmem:[#allocation7 + $0x1d8] sm:$0xff]
        %v582 = vld [vmem:[#allocation7 + $0x1e0] sm:$0xff]
        %v583 = vld [vmem:[#allocation7 + $0x1e8] sm:$0xff]
        %v584 = vld [vmem:[#allocation7 + $0x1f0] sm:$0xff]
        %v585 = vld [vmem:[#allocation7 + $0x1f8] sm:$0xff]
        %v586 = vld [vmem:[%s381] sm:$0xfe]
        %v587 = vld [vmem:[%s381 + $0x8] sm:$0xfe]
        %v588 = vld [vmem:[%s381 + $0x10] sm:$0x1]
        %v589 = vld [vmem:[%s381 + $0x18] sm:$0x1]
        %s590 = scalar_lea.vmem [#allocation7], 512
        %v591 = vld [vmem:[%s590] sm:$0xff]
        %v592 = vld [vmem:[%s590 + $0x8] sm:$0xff]
        %v593 = vld [vmem:[%s590 + $0x10] sm:$0xff]
        %v594 = vld [vmem:[%s590 + $0x18] sm:$0xff]
        %v595 = vld [vmem:[%s590 + $0x20] sm:$0xff]
        %v596 = vld [vmem:[%s590 + $0x28] sm:$0xff]
        %v597 = vld [vmem:[%s590 + $0x30] sm:$0xff]
        %v598 = vld [vmem:[%s590 + $0x38] sm:$0xff]
        %v599 = vld [vmem:[%s590 + $0x40] sm:$0xff]
        %v600 = vld [vmem:[%s590 + $0x48] sm:$0xff]
        %v601 = vld [vmem:[%s590 + $0x50] sm:$0xff]
        %v602 = vld [vmem:[%s590 + $0x58] sm:$0xff]
        %v603 = vld [vmem:[%s590 + $0x60] sm:$0xff]
        %v604 = vld [vmem:[%s590 + $0x68] sm:$0xff]
        %v605 = vld [vmem:[%s590 + $0x70] sm:$0xff]
        %v606 = vld [vmem:[%s590 + $0x78] sm:$0xff]
        %v607 = vld [vmem:[%s590 + $0x80] sm:$0xff]
        %v608 = vld [vmem:[%s590 + $0x88] sm:$0xff]
        %v609 = vld [vmem:[%s590 + $0x90] sm:$0xff]
        %v610 = vld [vmem:[%s590 + $0x98] sm:$0xff]
        %v611 = vld [vmem:[%s590 + $0xa0] sm:$0xff]
        %v612 = vld [vmem:[%s590 + $0xa8] sm:$0xff]
        %v613 = vld [vmem:[%s590 + $0xb0] sm:$0xff]
        %v614 = vld [vmem:[%s590 + $0xb8] sm:$0xff]
        %v615 = vld [vmem:[%s590 + $0xc0] sm:$0xff]
        %v616 = vld [vmem:[%s590 + $0xc8] sm:$0xff]
        %v617 = vld [vmem:[%s590 + $0xd0] sm:$0xff]
        %v618 = vld [vmem:[%s590 + $0xd8] sm:$0xff]
        %v619 = vld [vmem:[%s590 + $0xe0] sm:$0xff]
        %v620 = vld [vmem:[%s590 + $0xe8] sm:$0xff]
        %v621 = vld [vmem:[%s590 + $0xf0] sm:$0xff]
        %v622 = vld [vmem:[%s590 + $0xf8] sm:$0xff]
        %v623 = vld [vmem:[%s590 + $0x100] sm:$0xff]
        %v624 = vld [vmem:[%s590 + $0x108] sm:$0xff]
        %v625 = vld [vmem:[%s590 + $0x110] sm:$0xff]
        %v626 = vld [vmem:[%s590 + $0x118] sm:$0xff]
        %v627 = vld [vmem:[%s590 + $0x120] sm:$0xff]
        %v628 = vld [vmem:[%s590 + $0x128] sm:$0xff]
        %v629 = vld [vmem:[%s590 + $0x130] sm:$0xff]
        %v630 = vld [vmem:[%s590 + $0x138] sm:$0xff]
        %v631 = vld [vmem:[%s590 + $0x140] sm:$0xff]
        %v632 = vld [vmem:[%s590 + $0x148] sm:$0xff]
        %v633 = vld [vmem:[%s590 + $0x150] sm:$0xff]
        %v634 = vld [vmem:[%s590 + $0x158] sm:$0xff]
        %v635 = vld [vmem:[%s590 + $0x160] sm:$0xff]
        %v636 = vld [vmem:[%s590 + $0x168] sm:$0xff]
        %v637 = vld [vmem:[%s590 + $0x170] sm:$0xff]
        %v638 = vld [vmem:[%s590 + $0x178] sm:$0xff]
        %v639 = vld [vmem:[%s590 + $0x180] sm:$0xff]
        %v640 = vld [vmem:[%s590 + $0x188] sm:$0xff]
        %v641 = vld [vmem:[%s590 + $0x190] sm:$0xff]
        %v642 = vld [vmem:[%s590 + $0x198] sm:$0xff]
        %v643 = vld [vmem:[%s590 + $0x1a0] sm:$0xff]
        %v644 = vld [vmem:[%s590 + $0x1a8] sm:$0xff]
        %v645 = vld [vmem:[%s590 + $0x1b0] sm:$0xff]
        %v646 = vld [vmem:[%s590 + $0x1b8] sm:$0xff]
        %v647 = vld [vmem:[%s590 + $0x1c0] sm:$0xff]
        %v648 = vld [vmem:[%s590 + $0x1c8] sm:$0xff]
        %v649 = vld [vmem:[%s590 + $0x1d0] sm:$0xff]
        %v650 = vld [vmem:[%s590 + $0x1d8] sm:$0xff]
        %v651 = vld [vmem:[%s590 + $0x1e0] sm:$0xff]
        %v652 = vld [vmem:[%s590 + $0x1e8] sm:$0xff]
        %v653 = vld [vmem:[%s590 + $0x1f0] sm:$0xff]
        %v654 = vld [vmem:[%s590 + $0x1f8] sm:$0xff]
        %vm659 = vcmask 1046528
        %v660 = vrot.slane %v586, 1
        %v661 = vrot.slane %v588, 1
        %v662 = vsel %vm659, %v660, %v661
        %v663 = vrot.slane %v587, 1
        %v664 = vrot.slane %v589, 1
        %v665 = vsel %vm659, %v663, %v664
        %668 = vmatprep.subr.mxu0 %v592
        %669 = vmatpush1.msra.mxu0 %v591
        %670 = vmatprep.subr.mxu0 %v594
        %671 = vmatpush1.msra.mxu0 %v593
        %672 = vmatprep.subr.mxu0 %v596
        %673 = vmatpush1.msra.mxu0 %v595
        %674 = vmatprep.subr.mxu0 %v598
        %675 = vmatpush1.msra.mxu0 %v597
        %676 = vmatprep.subr.mxu0 %v600
        %677 = vmatpush1.msra.mxu0 %v599
        %678 = vmatprep.subr.mxu0 %v602
        %679 = vmatpush1.msra.mxu0 %v601
        %680 = vmatprep.subr.mxu0 %v604
        %681 = vmatpush1.msra.mxu0 %v603
        %682 = vmatprep.subr.mxu0 %v606
        %683 = vmatpush1.msra.mxu0 %v605
        %684 = vmatprep.subr.mxu0 %v608
        %685 = vmatpush1.msra.mxu0 %v607
        %686 = vmatprep.subr.mxu0 %v610
        %687 = vmatpush1.msra.mxu0 %v609
        %688 = vmatprep.subr.mxu0 %v612
        %689 = vmatpush1.msra.mxu0 %v611
        %690 = vmatprep.subr.mxu0 %v614
        %691 = vmatpush1.msra.mxu0 %v613
        %692 = vmatprep.subr.mxu0 %v616
        %693 = vmatpush1.msra.mxu0 %v615
        %694 = vmatprep.subr.mxu0 %v618
        %695 = vmatpush1.msra.mxu0 %v617
        %696 = vmatprep.subr.mxu0 %v620
        %697 = vmatpush1.msra.mxu0 %v619
        %698 = vmatprep.subr.mxu0 %v622
        %699 = vmatpush1.msra.mxu0 %v621
        %700 = vmatprep.subr.mxu0 %v624
        %701 = vmatpush1.msra.mxu0 %v623
        %702 = vmatprep.subr.mxu0 %v626
        %703 = vmatpush1.msra.mxu0 %v625
        %704 = vmatprep.subr.mxu0 %v628
        %705 = vmatpush1.msra.mxu0 %v627
        %706 = vmatprep.subr.mxu0 %v630
        %707 = vmatpush1.msra.mxu0 %v629
        %708 = vmatprep.subr.mxu0 %v632
        %709 = vmatpush1.msra.mxu0 %v631
        %710 = vmatprep.subr.mxu0 %v634
        %711 = vmatpush1.msra.mxu0 %v633
        %712 = vmatprep.subr.mxu0 %v636
        %713 = vmatpush1.msra.mxu0 %v635
        %714 = vmatprep.subr.mxu0 %v638
        %715 = vmatpush1.msra.mxu0 %v637
        %716 = vmatprep.subr.mxu0 %v640
        %717 = vmatpush1.msra.mxu0 %v639
        %718 = vmatprep.subr.mxu0 %v642
        %719 = vmatpush1.msra.mxu0 %v641
        %720 = vmatprep.subr.mxu0 %v644
        %721 = vmatpush1.msra.mxu0 %v643
        %722 = vmatprep.subr.mxu0 %v646
        %723 = vmatpush1.msra.mxu0 %v645
        %724 = vmatprep.subr.mxu0 %v648
        %725 = vmatpush1.msra.mxu0 %v647
        %726 = vmatprep.subr.mxu0 %v650
        %727 = vmatpush1.msra.mxu0 %v649
        %728 = vmatprep.subr.mxu0 %v652
        %729 = vmatpush1.msra.mxu0 %v651
        %730 = vmatprep.subr.mxu0 %v654
        %731 = vmatpush1.msra.mxu0 %v653
        %732 = vmatprep.mubr.f32.mxu0 %v665
        %733 = vmatmul.mubr.f32.gmra.mrb[0].mxu0 %v662
        %v734 = vpop.f32.mrb[0].mxu0
        %v735 = vadd.f32 0.0, %v734
        %v736 = vpop.f32.mrb[0].mxu0
        %v737 = vadd.f32 0.0, %v736
        %738 = vdwg.mxu0
        %739 = vmatprep.subr.mxu0 %v523
        %740 = vmatpush1.msra.mxu0 %v522
        %741 = vmatprep.subr.mxu0 %v525
        %742 = vmatpush1.msra.mxu0 %v524
        %743 = vmatprep.subr.mxu0 %v527
        %744 = vmatpush1.msra.mxu0 %v526
        %745 = vmatprep.subr.mxu0 %v529
        %746 = vmatpush1.msra.mxu0 %v528
        %747 = vmatprep.subr.mxu0 %v531
        %748 = vmatpush1.msra.mxu0 %v530
        %749 = vmatprep.subr.mxu0 %v533
        %750 = vmatpush1.msra.mxu0 %v532
        %751 = vmatprep.subr.mxu0 %v535
        %752 = vmatpush1.msra.mxu0 %v534
        %753 = vmatprep.subr.mxu0 %v537
        %754 = vmatpush1.msra.mxu0 %v536
        %755 = vmatprep.subr.mxu0 %v539
        %756 = vmatpush1.msra.mxu0 %v538
        %757 = vmatprep.subr.mxu0 %v541
        %758 = vmatpush1.msra.mxu0 %v540
        %759 = vmatprep.subr.mxu0 %v543
        %760 = vmatpush1.msra.mxu0 %v542
        %761 = vmatprep.subr.mxu0 %v545
        %762 = vmatpush1.msra.mxu0 %v544
        %763 = vmatprep.subr.mxu0 %v547
        %764 = vmatpush1.msra.mxu0 %v546
        %765 = vmatprep.subr.mxu0 %v549
        %766 = vmatpush1.msra.mxu0 %v548
        %767 = vmatprep.subr.mxu0 %v551
        %768 = vmatpush1.msra.mxu0 %v550
        %769 = vmatprep.subr.mxu0 %v553
        %770 = vmatpush1.msra.mxu0 %v552
        %771 = vmatprep.subr.mxu0 %v555
        %772 = vmatpush1.msra.mxu0 %v554
        %773 = vmatprep.subr.mxu0 %v557
        %774 = vmatpush1.msra.mxu0 %v556
        %775 = vmatprep.subr.mxu0 %v559
        %776 = vmatpush1.msra.mxu0 %v558
        %777 = vmatprep.subr.mxu0 %v561
        %778 = vmatpush1.msra.mxu0 %v560
        %779 = vmatprep.subr.mxu0 %v563
        %780 = vmatpush1.msra.mxu0 %v562
        %781 = vmatprep.subr.mxu0 %v565
        %782 = vmatpush1.msra.mxu0 %v564
        %783 = vmatprep.subr.mxu0 %v567
        %784 = vmatpush1.msra.mxu0 %v566
        %785 = vmatprep.subr.mxu0 %v569
        %786 = vmatpush1.msra.mxu0 %v568
        %787 = vmatprep.subr.mxu0 %v571
        %788 = vmatpush1.msra.mxu0 %v570
        %789 = vmatprep.subr.mxu0 %v573
        %790 = vmatpush1.msra.mxu0 %v572
        %791 = vmatprep.subr.mxu0 %v575
        %792 = vmatpush1.msra.mxu0 %v574
        %793 = vmatprep.subr.mxu0 %v577
        %794 = vmatpush1.msra.mxu0 %v576
        %795 = vmatprep.subr.mxu0 %v579
        %796 = vmatpush1.msra.mxu0 %v578
        %797 = vmatprep.subr.mxu0 %v581
        %798 = vmatpush1.msra.mxu0 %v580
        %799 = vmatprep.subr.mxu0 %v583
        %800 = vmatpush1.msra.mxu0 %v582
        %801 = vmatprep.subr.mxu0 %v585
        %802 = vmatpush1.msra.mxu0 %v584
        %803 = vmatprep.mubr.f32.mxu0 %v521
        %804 = vmatmul.mubr.f32.gmra.mrb[0].mxu0 %v520
        %v805 = vpop.f32.mrb[0].mxu0
        %v806 = vadd.f32 %v735, %v805
        %v807 = vpop.f32.mrb[0].mxu0
        %v808 = vadd.f32 %v737, %v807
        %809 = vdwg.mxu0
        %v810 = vld [vmem:[%s381] sm:$0xfc]
        %v811 = vld [vmem:[%s381 + $0x8] sm:$0xfc]
        %v812 = vld [vmem:[%s381 + $0x10] sm:$0x3]
        %v813 = vld [vmem:[%s381 + $0x18] sm:$0x3]
        %s814 = scalar_lea.vmem [#allocation7], 1024
        %v815 = vld [vmem:[%s814] sm:$0xff]
        %v816 = vld [vmem:[%s814 + $0x8] sm:$0xff]
        %v817 = vld [vmem:[%s814 + $0x10] sm:$0xff]
        %v818 = vld [vmem:[%s814 + $0x18] sm:$0xff]
        %v819 = vld [vmem:[%s814 + $0x20] sm:$0xff]
        %v820 = vld [vmem:[%s814 + $0x28] sm:$0xff]
        %v821 = vld [vmem:[%s814 + $0x30] sm:$0xff]
        %v822 = vld [vmem:[%s814 + $0x38] sm:$0xff]
        %v823 = vld [vmem:[%s814 + $0x40] sm:$0xff]
        %v824 = vld [vmem:[%s814 + $0x48] sm:$0xff]
        %v825 = vld [vmem:[%s814 + $0x50] sm:$0xff]
        %v826 = vld [vmem:[%s814 + $0x58] sm:$0xff]
        %v827 = vld [vmem:[%s814 + $0x60] sm:$0xff]
        %v828 = vld [vmem:[%s814 + $0x68] sm:$0xff]
        %v829 = vld [vmem:[%s814 + $0x70] sm:$0xff]
        %v830 = vld [vmem:[%s814 + $0x78] sm:$0xff]
        %v831 = vld [vmem:[%s814 + $0x80] sm:$0xff]
        %v832 = vld [vmem:[%s814 + $0x88] sm:$0xff]
        %v833 = vld [vmem:[%s814 + $0x90] sm:$0xff]
        %v834 = vld [vmem:[%s814 + $0x98] sm:$0xff]
        %v835 = vld [vmem:[%s814 + $0xa0] sm:$0xff]
        %v836 = vld [vmem:[%s814 + $0xa8] sm:$0xff]
        %v837 = vld [vmem:[%s814 + $0xb0] sm:$0xff]
        %v838 = vld [vmem:[%s814 + $0xb8] sm:$0xff]
        %v839 = vld [vmem:[%s814 + $0xc0] sm:$0xff]
        %v840 = vld [vmem:[%s814 + $0xc8] sm:$0xff]
        %v841 = vld [vmem:[%s814 + $0xd0] sm:$0xff]
        %v842 = vld [vmem:[%s814 + $0xd8] sm:$0xff]
        %v843 = vld [vmem:[%s814 + $0xe0] sm:$0xff]
        %v844 = vld [vmem:[%s814 + $0xe8] sm:$0xff]
        %v845 = vld [vmem:[%s814 + $0xf0] sm:$0xff]
        %v846 = vld [vmem:[%s814 + $0xf8] sm:$0xff]
        %v847 = vld [vmem:[%s814 + $0x100] sm:$0xff]
        %v848 = vld [vmem:[%s814 + $0x108] sm:$0xff]
        %v849 = vld [vmem:[%s814 + $0x110] sm:$0xff]
        %v850 = vld [vmem:[%s814 + $0x118] sm:$0xff]
        %v851 = vld [vmem:[%s814 + $0x120] sm:$0xff]
        %v852 = vld [vmem:[%s814 + $0x128] sm:$0xff]
        %v853 = vld [vmem:[%s814 + $0x130] sm:$0xff]
        %v854 = vld [vmem:[%s814 + $0x138] sm:$0xff]
        %v855 = vld [vmem:[%s814 + $0x140] sm:$0xff]
        %v856 = vld [vmem:[%s814 + $0x148] sm:$0xff]
        %v857 = vld [vmem:[%s814 + $0x150] sm:$0xff]
        %v858 = vld [vmem:[%s814 + $0x158] sm:$0xff]
        %v859 = vld [vmem:[%s814 + $0x160] sm:$0xff]
        %v860 = vld [vmem:[%s814 + $0x168] sm:$0xff]
        %v861 = vld [vmem:[%s814 + $0x170] sm:$0xff]
        %v862 = vld [vmem:[%s814 + $0x178] sm:$0xff]
        %v863 = vld [vmem:[%s814 + $0x180] sm:$0xff]
        %v864 = vld [vmem:[%s814 + $0x188] sm:$0xff]
        %v865 = vld [vmem:[%s814 + $0x190] sm:$0xff]
        %v866 = vld [vmem:[%s814 + $0x198] sm:$0xff]
        %v867 = vld [vmem:[%s814 + $0x1a0] sm:$0xff]
        %v868 = vld [vmem:[%s814 + $0x1a8] sm:$0xff]
        %v869 = vld [vmem:[%s814 + $0x1b0] sm:$0xff]
        %v870 = vld [vmem:[%s814 + $0x1b8] sm:$0xff]
        %v871 = vld [vmem:[%s814 + $0x1c0] sm:$0xff]
        %v872 = vld [vmem:[%s814 + $0x1c8] sm:$0xff]
        %v873 = vld [vmem:[%s814 + $0x1d0] sm:$0xff]
        %v874 = vld [vmem:[%s814 + $0x1d8] sm:$0xff]
        %v875 = vld [vmem:[%s814 + $0x1e0] sm:$0xff]
        %v876 = vld [vmem:[%s814 + $0x1e8] sm:$0xff]
        %v877 = vld [vmem:[%s814 + $0x1f0] sm:$0xff]
        %v878 = vld [vmem:[%s814 + $0x1f8] sm:$0xff]
        %vm883 = vcmask 1045504
        %v884 = vrot.slane %v810, 2
        %v885 = vrot.slane %v812, 2
        %v886 = vsel %vm883, %v884, %v885
        %v887 = vrot.slane %v811, 2
        %v888 = vrot.slane %v813, 2
        %v889 = vsel %vm883, %v887, %v888
        %892 = vmatprep.subr.mxu0 %v816
        %893 = vmatpush1.msra.mxu0 %v815
        %894 = vmatprep.subr.mxu0 %v818
        %895 = vmatpush1.msra.mxu0 %v817
        %896 = vmatprep.subr.mxu0 %v820
        %897 = vmatpush1.msra.mxu0 %v819
        %898 = vmatprep.subr.mxu0 %v822
        %899 = vmatpush1.msra.mxu0 %v821
        %900 = vmatprep.subr.mxu0 %v824
        %901 = vmatpush1.msra.mxu0 %v823
        %902 = vmatprep.subr.mxu0 %v826
        %903 = vmatpush1.msra.mxu0 %v825
        %904 = vmatprep.subr.mxu0 %v828
        %905 = vmatpush1.msra.mxu0 %v827
        %906 = vmatprep.subr.mxu0 %v830
        %907 = vmatpush1.msra.mxu0 %v829
        %908 = vmatprep.subr.mxu0 %v832
        %909 = vmatpush1.msra.mxu0 %v831
        %910 = vmatprep.subr.mxu0 %v834
        %911 = vmatpush1.msra.mxu0 %v833
        %912 = vmatprep.subr.mxu0 %v836
        %913 = vmatpush1.msra.mxu0 %v835
        %914 = vmatprep.subr.mxu0 %v838
        %915 = vmatpush1.msra.mxu0 %v837
        %916 = vmatprep.subr.mxu0 %v840
        %917 = vmatpush1.msra.mxu0 %v839
        %918 = vmatprep.subr.mxu0 %v842
        %919 = vmatpush1.msra.mxu0 %v841
        %920 = vmatprep.subr.mxu0 %v844
        %921 = vmatpush1.msra.mxu0 %v843
        %922 = vmatprep.subr.mxu0 %v846
        %923 = vmatpush1.msra.mxu0 %v845
        %924 = vmatprep.subr.mxu0 %v848
        %925 = vmatpush1.msra.mxu0 %v847
        %926 = vmatprep.subr.mxu0 %v850
        %927 = vmatpush1.msra.mxu0 %v849
        %928 = vmatprep.subr.mxu0 %v852
        %929 = vmatpush1.msra.mxu0 %v851
        %930 = vmatprep.subr.mxu0 %v854
        %931 = vmatpush1.msra.mxu0 %v853
        %932 = vmatprep.subr.mxu0 %v856
        %933 = vmatpush1.msra.mxu0 %v855
        %934 = vmatprep.subr.mxu0 %v858
        %935 = vmatpush1.msra.mxu0 %v857
        %936 = vmatprep.subr.mxu0 %v860
        %937 = vmatpush1.msra.mxu0 %v859
        %938 = vmatprep.subr.mxu0 %v862
        %939 = vmatpush1.msra.mxu0 %v861
        %940 = vmatprep.subr.mxu0 %v864
        %941 = vmatpush1.msra.mxu0 %v863
        %942 = vmatprep.subr.mxu0 %v866
        %943 = vmatpush1.msra.mxu0 %v865
        %944 = vmatprep.subr.mxu0 %v868
        %945 = vmatpush1.msra.mxu0 %v867
        %946 = vmatprep.subr.mxu0 %v870
        %947 = vmatpush1.msra.mxu0 %v869
        %948 = vmatprep.subr.mxu0 %v872
        %949 = vmatpush1.msra.mxu0 %v871
        %950 = vmatprep.subr.mxu0 %v874
        %951 = vmatpush1.msra.mxu0 %v873
        %952 = vmatprep.subr.mxu0 %v876
        %953 = vmatpush1.msra.mxu0 %v875
        %954 = vmatprep.subr.mxu0 %v878
        %955 = vmatpush1.msra.mxu0 %v877
        %956 = vmatprep.mubr.f32.mxu0 %v889
        %957 = vmatmul.mubr.f32.gmra.mrb[0].mxu0 %v886
        %v958 = vpop.f32.mrb[0].mxu0
        %v959 = vadd.f32 0.0, %v958
        %v960 = vpop.f32.mrb[0].mxu0
        %v961 = vadd.f32 0.0, %v960
        %962 = vdwg.mxu0
        %v963 = vadd.f32 %v806, %v959
        %v964 = vadd.f32 %v808, %v961
        %p965 = scmp.eq.s32.totalorder %s28, 0
        %p966 = scmp.eq.s32.totalorder %s29, 0
        %p967 = pnand %p965, %p966
        %p968 = pneg %p967
        // Predicated region
        $region65: #{tpu_custom_call.1} parent=51 // pred_check
          _
        $region66: #{tpu_custom_call.1} parent=51 // pred_check_branch
          %970 = sbr.rel (%p967) target = $region68
        $region67: #{tpu_custom_call.1} parent=51 // pred_region
          %971 = vst [vmem:[#allocation2] sm:$0xff] 0.0
          %972 = vst [vmem:[#allocation2 + $0x8] sm:$0xff] 0.0
        $region68: #{tpu_custom_call.1} parent=51 // pred_fallthru
          _
        // Predicated region
        $region69: #{tpu_custom_call.1} parent=51 // pred_check
          %p973 = pneg %p965
        $region70: #{tpu_custom_call.1} parent=51 // pred_check_branch
          %975 = sbr.rel (%p973) target = $region72
        $region71: #{tpu_custom_call.1} parent=51 // pred_region
          %v976 = vld [vmem:[#allocation2] ss:$8 sm:$0x3]
          %v977 = vrot.slane %v516, 4
          %v978 = vadd.f32 %v516, %v977
          %v979 = vrot.slane %v978, 2
          %v980 = vadd.f32 %v978, %v979
          %v981 = vrot.slane %v980, 1
          %v982 = vadd.f32 %v980, %v981
          %v983 = vrot.slane %v518, 4
          %v984 = vadd.f32 %v518, %v983
          %v985 = vrot.slane %v984, 2
          %v986 = vadd.f32 %v984, %v985
          %v987 = vrot.slane %v986, 1
          %v988 = vadd.f32 %v986, %v987
          %v991 = vcombine.low %v982, %v988
          %v993 = vunpack.c.l.s4 1966171168
          %v994 = vunpack.c.0.s8 %v993
          %v995 = vlaneseq
          %v996 = vshrl.u32 %v995, 7
          %v997 = vsub.s32 %v994, %v996
          %v998 = vrot.slane %v991, %v997
          %v1000 = vunpack.c.l.s4 1966171168
          %v1001 = vunpack.c.0.s8 %v1000
          %v1002 = vlaneseq
          %v1003 = vshrl.u32 %v1002, 7
          %v1004 = vsub.s32 %v1001, %v1003
          %v1005 = vrot.slane %v998, %v1004
          %v1007 = vadd.f32 %v976, %v1005
          %v1008 = vlaneseq
          %vm1009 = vcmp.ge.s32.totalorder %v1008, 0
          %vm1010 = vcmp.lt.s32.totalorder %v1008, 256
          %vm1011 = vmand %vm1009, %vm1010
          %1012 = vst.msk [vmem:[#allocation2] ss:$8 sm:$0x3] %vm1011, %v1007
          %1013 = vst.msk [vmem:[#allocation2] ss:$8 sm:$0x0] %vm1011, %v1007
          %s1014 = scalar_lea.vmem [#allocation2], 1
          %v1015 = vld [vmem:[%s1014] ss:$8 sm:$0x3]
          %v1016 = vmul.f32 %v516, %v516
          %v1017 = vmul.f32 %v518, %v518
          %v1018 = vrot.slane %v1016, 4
          %v1019 = vadd.f32 %v1016, %v1018
          %v1020 = vrot.slane %v1019, 2
          %v1021 = vadd.f32 %v1019, %v1020
          %v1022 = vrot.slane %v1021, 1
          %v1023 = vadd.f32 %v1021, %v1022
          %v1024 = vrot.slane %v1017, 4
          %v1025 = vadd.f32 %v1017, %v1024
          %v1026 = vrot.slane %v1025, 2
          %v1027 = vadd.f32 %v1025, %v1026
          %v1028 = vrot.slane %v1027, 1
          %v1029 = vadd.f32 %v1027, %v1028
          %v1032 = vcombine.low %v1023, %v1029
          %v1034 = vunpack.c.l.s4 1966171168
          %v1035 = vunpack.c.0.s8 %v1034
          %v1036 = vlaneseq
          %v1037 = vshrl.u32 %v1036, 7
          %v1038 = vsub.s32 %v1035, %v1037
          %v1039 = vrot.slane %v1032, %v1038
          %v1041 = vunpack.c.l.s4 1966171168
          %v1042 = vunpack.c.0.s8 %v1041
          %v1043 = vlaneseq
          %v1044 = vshrl.u32 %v1043, 7
          %v1045 = vsub.s32 %v1042, %v1044
          %v1046 = vrot.slane %v1039, %v1045
          %v1048 = vadd.f32 %v1015, %v1046
          %1049 = vst.msk [vmem:[%s1014] ss:$8 sm:$0x3] %vm1011, %v1048
          %1050 = vst.msk [vmem:[%s1014] ss:$8 sm:$0x0] %vm1011, %v1048
          %s1051 = scalar_lea.vmem [#allocation2], 2
          %v1052 = vld [vmem:[%s1051] ss:$8 sm:$0x3]
          %v1053 = vrot.slane %v963, 4
          %v1054 = vadd.f32 %v963, %v1053
          %v1055 = vrot.slane %v1054, 2
          %v1056 = vadd.f32 %v1054, %v1055
          %v1057 = vrot.slane %v1056, 1
          %v1058 = vadd.f32 %v1056, %v1057
          %v1059 = vrot.slane %v964, 4
          %v1060 = vadd.f32 %v964, %v1059
          %v1061 = vrot.slane %v1060, 2
          %v1062 = vadd.f32 %v1060, %v1061
          %v1063 = vrot.slane %v1062, 1
          %v1064 = vadd.f32 %v1062, %v1063
          %v1067 = vcombine.low %v1058, %v1064
          %v1069 = vunpack.c.l.s4 1966171168
          %v1070 = vunpack.c.0.s8 %v1069
          %v1071 = vlaneseq
          %v1072 = vshrl.u32 %v1071, 7
          %v1073 = vsub.s32 %v1070, %v1072
          %v1074 = vrot.slane %v1067, %v1073
          %v1076 = vunpack.c.l.s4 1966171168
          %v1077 = vunpack.c.0.s8 %v1076
          %v1078 = vlaneseq
          %v1079 = vshrl.u32 %v1078, 7
          %v1080 = vsub.s32 %v1077, %v1079
          %v1081 = vrot.slane %v1074, %v1080
          %v1083 = vadd.f32 %v1052, %v1081
          %1084 = vst.msk [vmem:[%s1051] ss:$8 sm:$0x3] %vm1011, %v1083
          %1085 = vst.msk [vmem:[%s1051] ss:$8 sm:$0x0] %vm1011, %v1083
          %s1086 = scalar_lea.vmem [#allocation2], 3
          %v1087 = vld [vmem:[%s1086] ss:$8 sm:$0x3]
          %v1088 = vmul.f32 %v963, %v963
          %v1089 = vmul.f32 %v964, %v964
          %v1090 = vrot.slane %v1088, 4
          %v1091 = vadd.f32 %v1088, %v1090
          %v1092 = vrot.slane %v1091, 2
          %v1093 = vadd.f32 %v1091, %v1092
          %v1094 = vrot.slane %v1093, 1
          %v1095 = vadd.f32 %v1093, %v1094
          %v1096 = vrot.slane %v1089, 4
          %v1097 = vadd.f32 %v1089, %v1096
          %v1098 = vrot.slane %v1097, 2
          %v1099 = vadd.f32 %v1097, %v1098
          %v1100 = vrot.slane %v1099, 1
          %v1101 = vadd.f32 %v1099, %v1100
          %v1104 = vcombine.low %v1095, %v1101
          %v1106 = vunpack.c.l.s4 1966171168
          %v1107 = vunpack.c.0.s8 %v1106
          %v1108 = vlaneseq
          %v1109 = vshrl.u32 %v1108, 7
          %v1110 = vsub.s32 %v1107, %v1109
          %v1111 = vrot.slane %v1104, %v1110
          %v1113 = vunpack.c.l.s4 1966171168
          %v1114 = vunpack.c.0.s8 %v1113
          %v1115 = vlaneseq
          %v1116 = vshrl.u32 %v1115, 7
          %v1117 = vsub.s32 %v1114, %v1116
          %v1118 = vrot.slane %v1111, %v1117
          %v1120 = vadd.f32 %v1087, %v1118
          %1121 = vst.msk [vmem:[%s1086] ss:$8 sm:$0x3] %vm1011, %v1120
          %1122 = vst.msk [vmem:[%s1086] ss:$8 sm:$0x0] %vm1011, %v1120
        $region72: #{tpu_custom_call.1} parent=51 // pred_fallthru
          _
        %p1123 = scmp.eq.s32.totalorder %s28, 1
        %p1124 = pnand %p1123, %p966
        %p1125 = pneg %p1124
        // Predicated region
        $region73: #{tpu_custom_call.1} parent=51 // pred_check
          _
        $region74: #{tpu_custom_call.1} parent=51 // pred_check_branch
          %1127 = sbr.rel (%p1124) target = $region76
        $region75: #{tpu_custom_call.1} parent=51 // pred_region
          %v1128 = vld [vmem:[#allocation2] sm:$0xff]
          %v1129 = vld [vmem:[#allocation2 + $0x8] sm:$0xff]
          %v1130 = vld [vmem:[#allocation9] sm:$0xff]
          %v1131 = vld [vmem:[#allocation9 + $0x8] sm:$0xff]
          %v1132 = vld [vmem:[#allocation9 + $0x10] sm:$0xff]
          %v1133 = vld [vmem:[#allocation9 + $0x18] sm:$0xff]
          %v1134 = vld [vmem:[#allocation9 + $0x20] sm:$0xff]
          %v1135 = vld [vmem:[#allocation9 + $0x28] sm:$0xff]
          %v1136 = vld [vmem:[#allocation9 + $0x30] sm:$0xff]
          %v1137 = vld [vmem:[#allocation9 + $0x38] sm:$0xff]
          %v1138 = vld [vmem:[#allocation9 + $0x40] sm:$0xff]
          %v1139 = vld [vmem:[#allocation9 + $0x48] sm:$0xff]
          %v1140 = vld [vmem:[#allocation9 + $0x50] sm:$0xff]
          %v1141 = vld [vmem:[#allocation9 + $0x58] sm:$0xff]
          %v1142 = vld [vmem:[#allocation9 + $0x60] sm:$0xff]
          %v1143 = vld [vmem:[#allocation9 + $0x68] sm:$0xff]
          %v1144 = vld [vmem:[#allocation9 + $0x70] sm:$0xff]
          %v1145 = vld [vmem:[#allocation9 + $0x78] sm:$0xff]
          %v1146 = vld [vmem:[#allocation9 + $0x80] sm:$0xff]
          %v1147 = vld [vmem:[#allocation9 + $0x88] sm:$0xff]
          %v1148 = vld [vmem:[#allocation9 + $0x90] sm:$0xff]
          %v1149 = vld [vmem:[#allocation9 + $0x98] sm:$0xff]
          %v1150 = vld [vmem:[#allocation9 + $0xa0] sm:$0xff]
          %v1151 = vld [vmem:[#allocation9 + $0xa8] sm:$0xff]
          %v1152 = vld [vmem:[#allocation9 + $0xb0] sm:$0xff]
          %v1153 = vld [vmem:[#allocation9 + $0xb8] sm:$0xff]
          %v1154 = vld [vmem:[#allocation9 + $0xc0] sm:$0xff]
          %v1155 = vld [vmem:[#allocation9 + $0xc8] sm:$0xff]
          %v1156 = vld [vmem:[#allocation9 + $0xd0] sm:$0xff]
          %v1157 = vld [vmem:[#allocation9 + $0xd8] sm:$0xff]
          %v1158 = vld [vmem:[#allocation9 + $0xe0] sm:$0xff]
          %v1159 = vld [vmem:[#allocation9 + $0xe8] sm:$0xff]
          %v1160 = vld [vmem:[#allocation9 + $0xf0] sm:$0xff]
          %v1161 = vld [vmem:[#allocation9 + $0xf8] sm:$0xff]
          %v1162 = vld [vmem:[#allocation9 + $0x100] sm:$0xff]
          %v1163 = vld [vmem:[#allocation9 + $0x108] sm:$0xff]
          %v1164 = vld [vmem:[#allocation9 + $0x110] sm:$0xff]
          %v1165 = vld [vmem:[#allocation9 + $0x118] sm:$0xff]
          %v1166 = vld [vmem:[#allocation9 + $0x120] sm:$0xff]
          %v1167 = vld [vmem:[#allocation9 + $0x128] sm:$0xff]
          %v1168 = vld [vmem:[#allocation9 + $0x130] sm:$0xff]
          %v1169 = vld [vmem:[#allocation9 + $0x138] sm:$0xff]
          %v1170 = vld [vmem:[#allocation9 + $0x140] sm:$0xff]
          %v1171 = vld [vmem:[#allocation9 + $0x148] sm:$0xff]
          %v1172 = vld [vmem:[#allocation9 + $0x150] sm:$0xff]
          %v1173 = vld [vmem:[#allocation9 + $0x158] sm:$0xff]
          %v1174 = vld [vmem:[#allocation9 + $0x160] sm:$0xff]
          %v1175 = vld [vmem:[#allocation9 + $0x168] sm:$0xff]
          %v1176 = vld [vmem:[#allocation9 + $0x170] sm:$0xff]
          %v1177 = vld [vmem:[#allocation9 + $0x178] sm:$0xff]
          %v1178 = vld [vmem:[#allocation9 + $0x180] sm:$0xff]
          %v1179 = vld [vmem:[#allocation9 + $0x188] sm:$0xff]
          %v1180 = vld [vmem:[#allocation9 + $0x190] sm:$0xff]
          %v1181 = vld [vmem:[#allocation9 + $0x198] sm:$0xff]
          %v1182 = vld [vmem:[#allocation9 + $0x1a0] sm:$0xff]
          %v1183 = vld [vmem:[#allocation9 + $0x1a8] sm:$0xff]
          %v1184 = vld [vmem:[#allocation9 + $0x1b0] sm:$0xff]
          %v1185 = vld [vmem:[#allocation9 + $0x1b8] sm:$0xff]
          %v1186 = vld [vmem:[#allocation9 + $0x1c0] sm:$0xff]
          %v1187 = vld [vmem:[#allocation9 + $0x1c8] sm:$0xff]
          %v1188 = vld [vmem:[#allocation9 + $0x1d0] sm:$0xff]
          %v1189 = vld [vmem:[#allocation9 + $0x1d8] sm:$0xff]
          %v1190 = vld [vmem:[#allocation9 + $0x1e0] sm:$0xff]
          %v1191 = vld [vmem:[#allocation9 + $0x1e8] sm:$0xff]
          %v1192 = vld [vmem:[#allocation9 + $0x1f0] sm:$0xff]
          %v1193 = vld [vmem:[#allocation9 + $0x1f8] sm:$0xff]
          %1194 = vmatprep.subr.mxu0 %v1131
          %1195 = vmatpush1.msra.mxu0 %v1130
          %1196 = vmatprep.subr.mxu0 %v1133
          %1197 = vmatpush1.msra.mxu0 %v1132
          %1198 = vmatprep.subr.mxu0 %v1135
          %1199 = vmatpush1.msra.mxu0 %v1134
          %1200 = vmatprep.subr.mxu0 %v1137
          %1201 = vmatpush1.msra.mxu0 %v1136
          %1202 = vmatprep.subr.mxu0 %v1139
          %1203 = vmatpush1.msra.mxu0 %v1138
          %1204 = vmatprep.subr.mxu0 %v1141
          %1205 = vmatpush1.msra.mxu0 %v1140
          %1206 = vmatprep.subr.mxu0 %v1143
          %1207 = vmatpush1.msra.mxu0 %v1142
          %1208 = vmatprep.subr.mxu0 %v1145
          %1209 = vmatpush1.msra.mxu0 %v1144
          %1210 = vmatprep.subr.mxu0 %v1147
          %1211 = vmatpush1.msra.mxu0 %v1146
          %1212 = vmatprep.subr.mxu0 %v1149
          %1213 = vmatpush1.msra.mxu0 %v1148
          %1214 = vmatprep.subr.mxu0 %v1151
          %1215 = vmatpush1.msra.mxu0 %v1150
          %1216 = vmatprep.subr.mxu0 %v1153
          %1217 = vmatpush1.msra.mxu0 %v1152
          %1218 = vmatprep.subr.mxu0 %v1155
          %1219 = vmatpush1.msra.mxu0 %v1154
          %1220 = vmatprep.subr.mxu0 %v1157
          %1221 = vmatpush1.msra.mxu0 %v1156
          %1222 = vmatprep.subr.mxu0 %v1159
          %1223 = vmatpush1.msra.mxu0 %v1158
          %1224 = vmatprep.subr.mxu0 %v1161
          %1225 = vmatpush1.msra.mxu0 %v1160
          %1226 = vmatprep.subr.mxu0 %v1163
          %1227 = vmatpush1.msra.mxu0 %v1162
          %1228 = vmatprep.subr.mxu0 %v1165
          %1229 = vmatpush1.msra.mxu0 %v1164
          %1230 = vmatprep.subr.mxu0 %v1167
          %1231 = vmatpush1.msra.mxu0 %v1166
          %1232 = vmatprep.subr.mxu0 %v1169
          %1233 = vmatpush1.msra.mxu0 %v1168
          %1234 = vmatprep.subr.mxu0 %v1171
          %1235 = vmatpush1.msra.mxu0 %v1170
          %1236 = vmatprep.subr.mxu0 %v1173
          %1237 = vmatpush1.msra.mxu0 %v1172
          %1238 = vmatprep.subr.mxu0 %v1175
          %1239 = vmatpush1.msra.mxu0 %v1174
          %1240 = vmatprep.subr.mxu0 %v1177
          %1241 = vmatpush1.msra.mxu0 %v1176
          %1242 = vmatprep.subr.mxu0 %v1179
          %1243 = vmatpush1.msra.mxu0 %v1178
          %1244 = vmatprep.subr.mxu0 %v1181
          %1245 = vmatpush1.msra.mxu0 %v1180
          %1246 = vmatprep.subr.mxu0 %v1183
          %1247 = vmatpush1.msra.mxu0 %v1182
          %1248 = vmatprep.subr.mxu0 %v1185
          %1249 = vmatpush1.msra.mxu0 %v1184
          %1250 = vmatprep.subr.mxu0 %v1187
          %1251 = vmatpush1.msra.mxu0 %v1186
          %1252 = vmatprep.subr.mxu0 %v1189
          %1253 = vmatpush1.msra.mxu0 %v1188
          %1254 = vmatprep.subr.mxu0 %v1191
          %1255 = vmatpush1.msra.mxu0 %v1190
          %1256 = vmatprep.subr.mxu0 %v1193
          %1257 = vmatpush1.msra.mxu0 %v1192
          %1258 = vmatprep.mubr.f32.mxu0 %v1129
          %1259 = vmatmul.mubr.f32.gmra.mrb[0].mxu0 %v1128
          %v1260 = vpop.f32.mrb[0].mxu0
          %v1261 = vadd.f32 0.0, %v1260
          %v1262 = vpop.f32.mrb[0].mxu0
          %v1263 = vadd.f32 0.0, %v1262
          %1264 = vdwg.mxu0
          %v1265 = vmul.f32 %v1261, 0.0009765625
          %v1266 = vmul.f32 %v1263, 0.0009765625
          %v1267 = vmul.f32 %v1265, %v1265
          %v1268 = vmul.f32 %v1266, %v1266
          %v1271 = vrot.slane %v1267, 7
          %v1272 = vrot.slane %v1268, 7
          %v1275 = vsub.f32 %v1265, %v1271
          %v1276 = vsub.f32 %v1266, %v1272
          %v1279 = vcombine.low %v1265, %v1266
          %v1281 = vunpack.c.l.s4 1966171168
          %v1282 = vunpack.c.0.s8 %v1281
          %v1283 = vlaneseq
          %v1284 = vshrl.u32 %v1283, 7
          %v1285 = vsub.s32 %v1282, %v1284
          %v1286 = vrot.slane %v1279, %v1285
          %v1288 = vunpack.c.l.s4 1966171168
          %v1289 = vunpack.c.0.s8 %v1288
          %v1290 = vlaneseq
          %v1291 = vshrl.u32 %v1290, 7
          %v1292 = vsub.s32 %v1289, %v1291
          %v1293 = vrot.slane %v1286, %v1292
          %v1295 = vlaneseq
          %vm1296 = vcmp.ge.s32.totalorder %v1295, 0
          %vm1297 = vcmp.lt.s32.totalorder %v1295, 256
          %vm1298 = vmand %vm1296, %vm1297
          %1299 = vst.msk [vmem:[#allocation3] ss:$8 sm:$0x3] %vm1298, %v1293
          %1300 = vst.msk [vmem:[#allocation3] ss:$8 sm:$0x0] %vm1298, %v1293
          %v1301 = vld [vmem:[%s5] sm:$0x3]
          %v1302 = vadd.f32 %v1275, 1e-05
          %v1303 = vadd.f32 %v1276, 1e-05
          %v1304 = vrsqrt.pop %v1302
          %v1305 = vrsqrt.pop %v1303
          %v1308 = vcombine.low %v1304, %v1305
          %v1310 = vunpack.c.l.s4 1966171168
          %v1311 = vunpack.c.0.s8 %v1310
          %v1312 = vlaneseq
          %v1313 = vshrl.u32 %v1312, 7
          %v1314 = vsub.s32 %v1311, %v1313
          %v1315 = vrot.slane %v1308, %v1314
          %v1316 = vcombine.high %v1315, %v1315
          %v1318 = vunpack.c.l.s4 1966171168
          %v1319 = vunpack.c.0.s8 %v1318
          %v1320 = vlaneseq
          %v1321 = vshrl.u32 %v1320, 7
          %v1322 = vsub.s32 %v1319, %v1321
          %v1323 = vrot.slane %v1316, %v1322
          %v1325 = vmul.f32 %v1301, %v1323
          %s1326 = scalar_lea.vmem [#allocation3], 1
          %1327 = vst.msk [vmem:[%s1326] ss:$8 sm:$0x3] %vm1298, %v1325
          %1328 = vst.msk [vmem:[%s1326] ss:$8 sm:$0x0] %vm1298, %v1325
          %v1329 = vcombine.high %v1293, %v1293
          %s1331 = scalar_lea.vmem [#allocation3], 2
          %1332 = vst.msk [vmem:[%s1331] ss:$8 sm:$0x3] %vm1298, %v1329
          %1333 = vst.msk [vmem:[%s1331] ss:$8 sm:$0x0] %vm1298, %v1329
          %v1334 = vld [vmem:[%s6] sm:$0x3]
          %v1335 = vcombine.high %v1323, %v1323
          %v1337 = vmul.f32 %v1334, %v1335
          %s1338 = scalar_lea.vmem [#allocation3], 3
          %1339 = vst.msk [vmem:[%s1338] ss:$8 sm:$0x3] %vm1298, %v1337
          %1340 = vst.msk [vmem:[%s1338] ss:$8 sm:$0x0] %vm1298, %v1337
        $region76: #{tpu_custom_call.1} parent=51 // pred_fallthru
          _
        // Predicated region
        $region77: #{tpu_custom_call.1} parent=51 // pred_check
          %p1341 = pneg %p1123
        $region78: #{tpu_custom_call.1} parent=51 // pred_check_branch
          %1343 = sbr.rel (%p1341) target = $region80
        $region79: #{tpu_custom_call.1} parent=51 // pred_region
          %v1344 = vld [vmem:[#allocation3] ss:$8 sm:$0x3]
          %s1345 = scalar_lea.vmem [#allocation3], 1
          %v1346 = vld [vmem:[%s1345] ss:$8 sm:$0x3]
          %s1347 = scalar_lea.vmem [#allocation3], 2
          %v1348 = vld [vmem:[%s1347] ss:$8 sm:$0x3]
          %s1349 = scalar_lea.vmem [#allocation3], 3
          %v1350 = vld [vmem:[%s1349] ss:$8 sm:$0x3]
          %v1352 = vlaneseq
          %v1353 = vshrl.u32 %v1352, 7
          %v1354 = vsub.s32 0, %v1353
          %v1355 = vrot.slane %v1344, %v1354
          %v1356 = vlaneseq
          %v1357 = vshrl.u32 %v1356, 7
          %v1358 = vsub.s32 1, %v1357
          %v1359 = vrot.slane %v1344, %v1358
          %v1362 = vsub.f32 %v516, %v1355
          %v1363 = vsub.f32 %v518, %v1359
          %v1365 = vlaneseq
          %v1366 = vshrl.u32 %v1365, 7
          %v1367 = vsub.s32 0, %v1366
          %v1368 = vrot.slane %v1346, %v1367
          %v1369 = vlaneseq
          %v1370 = vshrl.u32 %v1369, 7
          %v1371 = vsub.s32 1, %v1370
          %v1372 = vrot.slane %v1346, %v1371
          %v1375 = vmul.f32 %v1362, %v1368
          %v1376 = vmul.f32 %v1363, %v1372
          %v1378 = vlaneseq
          %v1379 = vshrl.u32 %v1378, 7
          %v1380 = vsub.s32 0, %v1379
          %v1381 = vrot.slane %v1348, %v1380
          %v1382 = vlaneseq
          %v1383 = vshrl.u32 %v1382, 7
          %v1384 = vsub.s32 1, %v1383
          %v1385 = vrot.slane %v1348, %v1384
          %v1388 = vsub.f32 %v963, %v1381
          %v1389 = vsub.f32 %v964, %v1385
          %v1391 = vlaneseq
          %v1392 = vshrl.u32 %v1391, 7
          %v1393 = vsub.s32 0, %v1392
          %v1394 = vrot.slane %v1350, %v1393
          %v1395 = vlaneseq
          %v1396 = vshrl.u32 %v1395, 7
          %v1397 = vsub.s32 1, %v1396
          %v1398 = vrot.slane %v1350, %v1397
          %v1401 = vmul.f32 %v1388, %v1394
          %v1402 = vmul.f32 %v1389, %v1398
          %v1403 = vadd.f32 %v1375, %v1401
          %v1404 = vadd.f32 %v1376, %v1402
          %v1405 = vld [vmem:[%s7] sm:$0x3]
          %v1407 = vlaneseq
          %v1408 = vshrl.u32 %v1407, 7
          %v1409 = vsub.s32 0, %v1408
          %v1410 = vrot.slane %v1405, %v1409
          %v1411 = vlaneseq
          %v1412 = vshrl.u32 %v1411, 7
          %v1413 = vsub.s32 1, %v1412
          %v1414 = vrot.slane %v1405, %v1413
          %v1417 = vadd.f32 %v1403, %v1410
          %v1418 = vadd.f32 %v1404, %v1414
          %1419 = vst [vmem:[%s371] sm:$0xff] %v1417
          %1420 = vst [vmem:[%s371 + $0x8] sm:$0xff] %v1418
        $region80: #{tpu_custom_call.1} parent=51 // pred_fallthru
          _
        %s1421 = sand.u32 %s224, 1
        %s1422 = scalar_lea.sflag [#allocation6], %s1421
        %s1423 = sand.u32 %s224, 1
        %s1424 = smul.addr %s1423, 16
        %s1425 = scalar_lea.vmem [#allocation10], %s1424
        // Predicated region
        $region81: #{tpu_custom_call.1} parent=51 // pred_check
          %p1426 = pneg %p234
        $region82: #{tpu_custom_call.1} parent=51 // pred_check_branch
          %1428 = sbr.rel (%p1426) target = $region84
        $region83: #{tpu_custom_call.1} parent=51 // pred_region
          %s1429 = smul.u32 %s28, %s29
          %s1431 = ssub.s32 256, 256
          %1432 = vsyncadd %s1422, %s1431
          %s1433 = smul.addr %s1429, 2
          %s1434 = smul.addr %s1433, 128
          %s1435 = scalar_lea.hbm %s8, %s1434
          %s1437 = sshll.u32 %s1425, 4
          %s1438 = int_to_ptr.vmem [resolvable:$true] %s1437
          %1440 = dma.vmem_to_hbm [thread:$0]  %s1438, 256, %s1435, %s1422
        $region84: #{tpu_custom_call.1} parent=51 // pred_fallthru
          _
      $region52: #{tpu_custom_call.1} parent=5 // pred_fallthru
        _
      %p1441 = scmp.le.s32.totalorder 2, %s19
      // Predicated region
      $region85: #{tpu_custom_call.1} parent=5 // pred_check
        %p1442 = pneg %p1441
      $region86: #{tpu_custom_call.1} parent=5 // pred_check_branch
        %1444 = sbr.rel (%p1442) target = $region88
      $region87: #{tpu_custom_call.1} parent=5 // pred_region
        %s1445 = ssub.s32 %s19, 2
        // Predicated region
        $region89: #{tpu_custom_call.1} parent=87 // pred_check
          %p1446 = pneg %p240
        $region90: #{tpu_custom_call.1} parent=87 // pred_check_branch
          %1448 = sbr.rel (%p1446) target = $region92
        $region91: #{tpu_custom_call.1} parent=87 // pred_region
          %s1449 = sand.u32 %s225, 1
          %s1450 = scalar_lea.sflag [#allocation6], %s1449
          %s1451 = sand.u32 %s225, 1
          %s1452 = smul.addr %s1451, 16
          %s1453 = scalar_lea.vmem [#allocation10], %s1452
          %1454 = dma.done %s1450, 256
        $region92: #{tpu_custom_call.1} parent=87 // pred_fallthru
          _
      $region88: #{tpu_custom_call.1} parent=5 // pred_fallthru
        _
    $region6: #{tpu_custom_call.1} parent=1 // loop_footer
      %s23 = sadd.s32 1, %s19
    $region7: #{tpu_custom_call.1} parent=1 // loop_footer_branch
      %18 = sbr.rel target = $region3
    $region8: #{tpu_custom_call.1} parent=1 // loop_exit
      _
    %1455 = vsyncpa [#allocation5], 1
    %s1456 = scalar_lea.sflag [#allocation5], 1
    %1457 = vsyncpa %s1456, 1
    %1458 = vsyncpa [#allocation8], 1
    %1459 = vsyncpa [#allocation6], 1
    %s1460 = scalar_lea.sflag [#allocation6], 1
    %1461 = vsyncpa %s1460, 1

</llo_original>
